<compile_context>
chip_gen: v6e
topology: v6e:2x2x1
jax: 0.10.0
libtpu: 0.0.40
codegen_flags: <defaults>
</compile_context>

<pallas_src>
import functools

import jax
import jax.numpy as jnp
from jax.experimental import pallas as pl
from jax.experimental.pallas import tpu as pltpu


def _fill_rowpad(b_ref, v, c, H, W, O):
    """Write v (c, H*W) into b_ref[:c] with 1 reflected row above and below.

    Layout of b_ref (Cmax, L): element at flat index O + r*W + col holds the
    row-reflected image at padded row r in [-1, H], column col.  Only
    [O - W, O + H*W + W) is written; the small slack regions at both ends are
    never *selected* by the column masks in the im2col build.
    """
    HW = H * W
    b_ref[:c, O:O + HW] = v                                        # rows 0..H-1
    b_ref[:c, O - W:O] = v[:, W:2 * W]                             # reflect row 1
    b_ref[:c, O + HW:O + HW + W] = v[:, (H - 2) * W:(H - 1) * W]   # reflect row H-2


def resblock_kernel(x_ref, w1_ref, w2_ref, o_ref, b_ref, p_ref, *,
                    H, W, B, neg_slope):
    HW = H * W
    O = 2 * W                       # data offset inside the row-padded buffer
    cin = x_ref.shape[1]
    cmid = w1_ref.shape[0]
    p_dtype = p_ref.dtype

    col = jax.lax.broadcasted_iota(jnp.int32, (1, HW), 1) % W
    col_first = col == 0
    col_last = col == W - 1

    # Hoist the mask broadcast: one (c, HW) broadcast per channel count,
    # reused across the 3 kh taps, all B images and (if cin == cmid) both convs.
    masks = {}

    def get_masks(c):
        if c not in masks:
            masks[c] = (jnp.broadcast_to(col_first, (c, HW)),
                        jnp.broadcast_to(col_last, (c, HW)))
        return masks[c]

    def build_im2col(c, b_img):
        """im2col of image slot b_img (from row-padded b_ref[:c]) into p_ref.

        Row reflection is already materialized in b_ref; column reflection is a
        per-lane select between the +1/-1 shifted *ref slices* (no full padded
        buffer is ever loaded into vregs).
        """
        cf, cl = get_masks(c)
        lo = b_img * HW
        for kh in range(3):
            base = O + (kh - 1) * W
            sm1 = b_ref[:c, base - 1:base - 1 + HW]   # column w-1 (normal case)
            s00 = b_ref[:c, base:base + HW]           # column w
            sp1 = b_ref[:c, base + 1:base + 1 + HW]   # column w+1 (normal case)
            t = kh * 3
            # kw=0: needs col w-1, reflected to col 1 (= w+1) at w == 0
            p_ref[(t + 0) * c:(t + 1) * c, lo:lo + HW] = (
                jnp.where(cf, sp1, sm1).astype(p_dtype))
            # kw=1: center column, no reflection needed
            p_ref[(t + 1) * c:(t + 2) * c, lo:lo + HW] = s00.astype(p_dtype)
            # kw=2: needs col w+1, reflected to col W-2 (= w-1) at w == W-1
            p_ref[(t + 2) * c:(t + 3) * c, lo:lo + HW] = (
                jnp.where(cl, sm1, sp1).astype(p_dtype))

    # ---- conv1: reflection pad + 3x3 conv as ONE im2col matmul over B*HW ----
    for b in range(B):
        _fill_rowpad(b_ref, x_ref[b].astype(jnp.float32), cin, H, W, O)
        build_im2col(cin, b)
    h1 = jnp.dot(w1_ref[...], p_ref[:9 * cin, :],
                 preferred_element_type=jnp.float32)

    # ---- LeakyReLU(0.2) (f32 on the VPU) ----
    h1 = jnp.where(h1 >= 0, h1, neg_slope * h1)

    # ---- Dropout(0.5): inference-mode identity (see TODO at top) ----

    # ---- conv2: reuses the SAME b_ref / p_ref scratch ----
    for b in range(B):
        _fill_rowpad(b_ref, h1[:, b * HW:(b + 1) * HW], cmid, H, W, O)
        build_im2col(cmid, b)
    y = jnp.dot(w2_ref[...], p_ref[:9 * cmid, :],
                preferred_element_type=jnp.float32)

    # ---- residual: re-read x from its resident VMEM block (bounds live ranges) ----
    for b in range(B):
        o_ref[b] = (x_ref[b].astype(jnp.float32)
                    + y[:, b * HW:(b + 1) * HW]).astype(o_ref.dtype)


def resblock_forward(x_nchw, w1, w2, *, images_per_block=None, mxu_dtype=None):
    """x_nchw: (N, Cin, H, W); w1: (Cmid, Cin, 3, 3); w2: (Cout, Cmid, 3, 3)."""
    N, Cin, H, W = x_nchw.shape
    Cmid, Cout = w1.shape[0], w2.shape[0]
    assert Cout == Cin, "residual x + conv(x) requires in_c == out_c"
    assert H >= 3 and W >= 3, "ReflectionPad2d(1) needs spatial dims >= 3"
    HW = H * W
    L = (H + 4) * W                 # row-padded flat buffer length (with slack)
    Cmax = max(Cin, Cmid)

    if mxu_dtype is None:
        # bf16 operands only pay off (and only cost accuracy) at larger channel
        # counts; at tiny K=9*C keep f32 so toy-shape numerics match f32 refs.
        mxu_dtype = jnp.bfloat16 if 9 * Cmax >= 128 else jnp.float32
    itemsize = 2 if mxu_dtype == jnp.bfloat16 else 4

    if images_per_block is None:
        # Pack images per grid step (amortizes ~0.35 us/step overhead and widens
        # the matmul N dim) while the im2col scratch stays under ~4 MiB.
        per_img = 9 * Cmax * HW * itemsize
        images_per_block = max(1, min(N, (4 << 20) // max(1, per_img)))
    B = images_per_block
    while N % B:                    # B must divide N
        B -= 1

    # No spatial transpose: NCHW is already spatial-last; flattening (H, W) is a
    # free contiguous reshape, giving a lane-dense last dim of H*W.  Keep the
    # HBM-facing activation dtype unchanged (no wrapper upcast).
    x2 = x_nchw.reshape(N, Cin, HW)
    # im2col weight layout: row index = (kh*3 + kw)*Cin + ci
    w1m = jnp.transpose(w1, (0, 2, 3, 1)).reshape(Cmid, 9 * Cin).astype(mxu_dtype)
    w2m = jnp.transpose(w2, (0, 2, 3, 1)).reshape(Cout, 9 * Cmid).astype(mxu_dtype)

    kernel = functools.partial(resblock_kernel, H=H, W=W, B=B, neg_slope=0.2)

    out = pl.pallas_call(
        kernel,
        out_shape=jax.ShapeDtypeStruct((N, Cout, HW), x_nchw.dtype),
        grid_spec=pltpu.PrefetchScalarGridSpec(
            num_scalar_prefetch=0,
            grid=(N // B,),
            in_specs=[
                pl.BlockSpec((B, Cin, HW), lambda n: (n, 0, 0)),
                pl.BlockSpec((Cmid, 9 * Cin), lambda n: (0, 0)),
                pl.BlockSpec((Cout, 9 * Cmid), lambda n: (0, 0)),
            ],
            out_specs=pl.BlockSpec((B, Cout, HW), lambda n: (n, 0, 0)),
            scratch_shapes=[
                pltpu.VMEM((Cmax, L), jnp.float32),          # shared row-padded buf
                pltpu.VMEM((9 * Cmax, B * HW), mxu_dtype),   # shared im2col buf
            ],
        ),
        # Batch axis is independent -> "parallel" lets v7x shard it over its
        # 2 TensorCores; harmless on single-TC v5e/v6e.
        compiler_params=pltpu.CompilerParams(dimension_semantics=("parallel",)),
    )(x2, w1m, w2m)

    return out.reshape(N, Cout, H, W)


def resblock_reference(x_nchw, w1, w2):
    """Pure-JAX reference (eval-mode dropout, bias=False) for validation."""
    x = jnp.transpose(x_nchw, (0, 2, 3, 1)).astype(jnp.float32)
    w1h = jnp.transpose(w1, (2, 3, 1, 0)).astype(jnp.float32)  # HWIO
    w2h = jnp.transpose(w2, (2, 3, 1, 0)).astype(jnp.float32)
    dn = ('NHWC', 'HWIO', 'NHWC')
    xp = jnp.pad(x, ((0, 0), (1, 1), (1, 1), (0, 0)), mode='reflect')
    h = jax.lax.conv_general_dilated(xp, w1h, (1, 1), 'VALID', dimension_numbers=dn)
    h = jnp.where(h >= 0, h, 0.2 * h)
    hp = jnp.pad(h, ((0, 0), (1, 1), (1, 1), (0, 0)), mode='reflect')
    y = jax.lax.conv_general_dilated(hp, w2h, (1, 1), 'VALID', dimension_numbers=dn)
    return jnp.transpose(x + y, (0, 3, 1, 2))


if __name__ == "__main__":
    # ResBlock(in_c=4, out_c=4) on a (2, 4, 16, 16) NCHW input (bias=False convs).
    N, C, H, W = 2, 4, 16, 16
    key = jax.random.PRNGKey(0)
    kx, k1, k2 = jax.random.split(key, 3)

    x = jax.random.normal(kx, (N, C, H, W), jnp.float32)
    w1 = jax.random.normal(k1, (C, C, 3, 3), jnp.float32) * 0.1
    w2 = jax.random.normal(k2, (C, C, 3, 3), jnp.float32) * 0.1

    ref = jax.block_until_ready(resblock_reference(x, w1, w2))

    # Default path (f32 MXU operands at this tiny K) -- tight tolerance.
    out = jax.block_until_ready(resblock_forward(x, w1, w2))
    assert out.shape == (N, C, H, W), out.shape
    err = float(jnp.max(jnp.abs(out - ref)))
    assert jnp.allclose(out, ref, atol=1e-4, rtol=1e-4), err

    # bf16-MXU path (what production channel counts auto-select) -- looser tol.
    out_bf16 = jax.block_until_ready(
        resblock_forward(x, w1, w2, mxu_dtype=jnp.bfloat16))
    err_bf16 = float(jnp.max(jnp.abs(out_bf16 - ref)))
    assert jnp.allclose(out_bf16, ref, atol=5e-2, rtol=5e-2), err_bf16

    print("KERNEL_OK")
</pallas_src>

<mosaic_0001>
module attributes {stable_mosaic.version = 11 : i64} {
  func.func @resblock_kernel(%arg0: i32, %arg1: memref<2x4x256xf32, #tpu.memory_space<vmem>>, %arg2: memref<4x36xf32, #tpu.memory_space<vmem>>, %arg3: memref<4x36xf32, #tpu.memory_space<vmem>>, %arg4: memref<2x4x256xf32, #tpu.memory_space<vmem>>, %arg5: memref<4x320xf32, #tpu.memory_space<vmem>>, %arg6: memref<36x512xf32, #tpu.memory_space<vmem>>) attributes {dimension_semantics = [#tpu.dimension_semantics<parallel>], iteration_bounds = array<i64: 1>, scalar_prefetch = 0 : i64, scratch_operands = 2 : i64, tpu.core_type = #tpu.core_type<tc>, window_params = [{transform_indices = @transform_0, window_bounds = array<i64: 2, 4, 256>}, {pipeline_mode = #tpu.pipeline_mode<synchronous>, transform_indices = @transform_1, window_bounds = array<i64: 4, 36>}, {pipeline_mode = #tpu.pipeline_mode<synchronous>, transform_indices = @transform_2, window_bounds = array<i64: 4, 36>}, {transform_indices = @transform_3, window_bounds = array<i64: 2, 4, 256>}]} {
    %0 = tpu.iota {dimensions = array<i32: 1>} : vector<1x256xi32>
    %c16_i32 = arith.constant 16 : i32
    %c0_i32 = arith.constant 0 : i32
    %1 = arith.cmpi eq, %c16_i32, %c0_i32 : i32
    %c1_i32 = arith.constant 1 : i32
    %2 = arith.select %1, %c1_i32, %c16_i32 : i32
    %3 = vector.broadcast %2 : i32 to vector<1x256xi32>
    %4 = arith.remsi %0, %3 : vector<1x256xi32>
    %c0_i32_0 = arith.constant 0 : i32
    %5 = vector.broadcast %c0_i32_0 : i32 to vector<1x256xi32>
    %6 = arith.cmpi ne, %4, %5 : vector<1x256xi32>
    %c0_i32_1 = arith.constant 0 : i32
    %7 = vector.broadcast %c0_i32_1 : i32 to vector<1x256xi32>
    %8 = arith.cmpi slt, %4, %7 : vector<1x256xi32>
    %c0_i32_2 = arith.constant 0 : i32
    %9 = arith.cmpi slt, %2, %c0_i32_2 : i32
    %10 = vector.broadcast %9 : i1 to vector<1x256xi1>
    %11 = vector.broadcast %10 : vector<1x256xi1> to vector<1x256xi1>
    %12 = arith.xori %8, %11 : vector<1x256xi1>
    %13 = arith.andi %12, %6 : vector<1x256xi1>
    %14 = vector.broadcast %2 : i32 to vector<1x256xi32>
    %15 = arith.addi %4, %14 : vector<1x256xi32>
    %16 = arith.select %13, %15, %4 : vector<1x256xi1>, vector<1x256xi32>
    %c0_i32_3 = arith.constant 0 : i32
    %17 = vector.broadcast %c0_i32_3 : i32 to vector<1x256xi32>
    %18 = arith.cmpi eq, %16, %17 : vector<1x256xi32>
    %c15_i32 = arith.constant 15 : i32
    %19 = vector.broadcast %c15_i32 : i32 to vector<1x256xi32>
    %20 = arith.cmpi eq, %16, %19 : vector<1x256xi32>
    %c0 = arith.constant 0 : index
    %c0_4 = arith.constant 0 : index
    %c0_5 = arith.constant 0 : index
    %21 = vector.load %arg1[%c0, %c0_4, %c0_5] : memref<2x4x256xf32, #tpu.memory_space<vmem>>, vector<1x4x256xf32>
    %22 = vector.shape_cast %21 : vector<1x4x256xf32> to vector<4x256xf32>
    %c0_6 = arith.constant 0 : index
    %c32 = arith.constant 32 : index
    %23 = vector.load %arg5[%c0_6, %c32] : memref<4x320xf32, #tpu.memory_space<vmem>>, vector<4x256xf32>
    tpu.vector_store %arg5[%c0_6, %c32], %22 {strides = array<i32>} : memref<4x320xf32, #tpu.memory_space<vmem>>, vector<4x256xf32>,
    %24 = vector.extract_strided_slice %22 {offsets = [0, 16], sizes = [4, 16], strides = [1, 1]} : vector<4x256xf32> to vector<4x16xf32>
    %c0_7 = arith.constant 0 : index
    %c16 = arith.constant 16 : index
    %25 = vector.load %arg5[%c0_7, %c16] : memref<4x320xf32, #tpu.memory_space<vmem>>, vector<4x16xf32>
    tpu.vector_store %arg5[%c0_7, %c16], %24 {strides = array<i32>} : memref<4x320xf32, #tpu.memory_space<vmem>>, vector<4x16xf32>,
    %26 = vector.extract_strided_slice %22 {offsets = [0, 224], sizes = [4, 16], strides = [1, 1]} : vector<4x256xf32> to vector<4x16xf32>
    %c0_8 = arith.constant 0 : index
    %c288 = arith.constant 288 : index
    %27 = vector.load %arg5[%c0_8, %c288] : memref<4x320xf32, #tpu.memory_space<vmem>>, vector<4x16xf32>
    tpu.vector_store %arg5[%c0_8, %c288], %26 {strides = array<i32>} : memref<4x320xf32, #tpu.memory_space<vmem>>, vector<4x16xf32>,
    %28 = vector.shape_cast %18 : vector<1x256xi1> to vector<1x256xi1>
    %29 = vector.broadcast %28 : vector<1x256xi1> to vector<4x256xi1>
    %30 = vector.shape_cast %20 : vector<1x256xi1> to vector<1x256xi1>
    %31 = vector.broadcast %30 : vector<1x256xi1> to vector<4x256xi1>
    %c0_9 = arith.constant 0 : index
    %c15 = arith.constant 15 : index
    %32 = vector.load %arg5[%c0_9, %c15] : memref<4x320xf32, #tpu.memory_space<vmem>>, vector<4x256xf32>
    %c0_10 = arith.constant 0 : index
    %c16_11 = arith.constant 16 : index
    %33 = vector.load %arg5[%c0_10, %c16_11] : memref<4x320xf32, #tpu.memory_space<vmem>>, vector<4x256xf32>
    %c0_12 = arith.constant 0 : index
    %c17 = arith.constant 17 : index
    %34 = vector.load %arg5[%c0_12, %c17] : memref<4x320xf32, #tpu.memory_space<vmem>>, vector<4x256xf32>
    %35 = arith.select %29, %34, %32 : vector<4x256xi1>, vector<4x256xf32>
    %c0_13 = arith.constant 0 : index
    %c0_14 = arith.constant 0 : index
    %36 = vector.load %arg6[%c0_13, %c0_14] : memref<36x512xf32, #tpu.memory_space<vmem>>, vector<4x256xf32>
    tpu.vector_store %arg6[%c0_13, %c0_14], %35 {strides = array<i32>} : memref<36x512xf32, #tpu.memory_space<vmem>>, vector<4x256xf32>,
    %c4 = arith.constant 4 : index
    %c0_15 = arith.constant 0 : index
    %37 = vector.load %arg6[%c4, %c0_15] : memref<36x512xf32, #tpu.memory_space<vmem>>, vector<4x256xf32>
    tpu.vector_store %arg6[%c4, %c0_15], %33 {strides = array<i32>} : memref<36x512xf32, #tpu.memory_space<vmem>>, vector<4x256xf32>,
    %38 = arith.select %31, %32, %34 : vector<4x256xi1>, vector<4x256xf32>
    %c8 = arith.constant 8 : index
    %c0_16 = arith.constant 0 : index
    %39 = vector.load %arg6[%c8, %c0_16] : memref<36x512xf32, #tpu.memory_space<vmem>>, vector<4x256xf32>
    tpu.vector_store %arg6[%c8, %c0_16], %38 {strides = array<i32>} : memref<36x512xf32, #tpu.memory_space<vmem>>, vector<4x256xf32>,
    %c0_17 = arith.constant 0 : index
    %c31 = arith.constant 31 : index
    %40 = vector.load %arg5[%c0_17, %c31] : memref<4x320xf32, #tpu.memory_space<vmem>>, vector<4x256xf32>
    %c0_18 = arith.constant 0 : index
    %c32_19 = arith.constant 32 : index
    %41 = vector.load %arg5[%c0_18, %c32_19] : memref<4x320xf32, #tpu.memory_space<vmem>>, vector<4x256xf32>
    %c0_20 = arith.constant 0 : index
    %c33 = arith.constant 33 : index
    %42 = vector.load %arg5[%c0_20, %c33] : memref<4x320xf32, #tpu.memory_space<vmem>>, vector<4x256xf32>
    %43 = arith.select %29, %42, %40 : vector<4x256xi1>, vector<4x256xf32>
    %c12 = arith.constant 12 : index
    %c0_21 = arith.constant 0 : index
    %44 = vector.load %arg6[%c12, %c0_21] : memref<36x512xf32, #tpu.memory_space<vmem>>, vector<4x256xf32>
    tpu.vector_store %arg6[%c12, %c0_21], %43 {strides = array<i32>} : memref<36x512xf32, #tpu.memory_space<vmem>>, vector<4x256xf32>,
    %c16_22 = arith.constant 16 : index
    %c0_23 = arith.constant 0 : index
    %45 = vector.load %arg6[%c16_22, %c0_23] : memref<36x512xf32, #tpu.memory_space<vmem>>, vector<4x256xf32>
    tpu.vector_store %arg6[%c16_22, %c0_23], %41 {strides = array<i32>} : memref<36x512xf32, #tpu.memory_space<vmem>>, vector<4x256xf32>,
    %46 = arith.select %31, %40, %42 : vector<4x256xi1>, vector<4x256xf32>
    %c20 = arith.constant 20 : index
    %c0_24 = arith.constant 0 : index
    %47 = vector.load %arg6[%c20, %c0_24] : memref<36x512xf32, #tpu.memory_space<vmem>>, vector<4x256xf32>
    tpu.vector_store %arg6[%c20, %c0_24], %46 {strides = array<i32>} : memref<36x512xf32, #tpu.memory_space<vmem>>, vector<4x256xf32>,
    %c0_25 = arith.constant 0 : index
    %c47 = arith.constant 47 : index
    %48 = vector.load %arg5[%c0_25, %c47] : memref<4x320xf32, #tpu.memory_space<vmem>>, vector<4x256xf32>
    %c0_26 = arith.constant 0 : index
    %c48 = arith.constant 48 : index
    %49 = vector.load %arg5[%c0_26, %c48] : memref<4x320xf32, #tpu.memory_space<vmem>>, vector<4x256xf32>
    %c0_27 = arith.constant 0 : index
    %c49 = arith.constant 49 : index
    %50 = vector.load %arg5[%c0_27, %c49] : memref<4x320xf32, #tpu.memory_space<vmem>>, vector<4x256xf32>
    %51 = arith.select %29, %50, %48 : vector<4x256xi1>, vector<4x256xf32>
    %c24 = arith.constant 24 : index
    %c0_28 = arith.constant 0 : index
    %52 = vector.load %arg6[%c24, %c0_28] : memref<36x512xf32, #tpu.memory_space<vmem>>, vector<4x256xf32>
    tpu.vector_store %arg6[%c24, %c0_28], %51 {strides = array<i32>} : memref<36x512xf32, #tpu.memory_space<vmem>>, vector<4x256xf32>,
    %c28 = arith.constant 28 : index
    %c0_29 = arith.constant 0 : index
    %53 = vector.load %arg6[%c28, %c0_29] : memref<36x512xf32, #tpu.memory_space<vmem>>, vector<4x256xf32>
    tpu.vector_store %arg6[%c28, %c0_29], %49 {strides = array<i32>} : memref<36x512xf32, #tpu.memory_space<vmem>>, vector<4x256xf32>,
    %54 = arith.select %31, %48, %50 : vector<4x256xi1>, vector<4x256xf32>
    %c32_30 = arith.constant 32 : index
    %c0_31 = arith.constant 0 : index
    %55 = vector.load %arg6[%c32_30, %c0_31] : memref<36x512xf32, #tpu.memory_space<vmem>>, vector<4x256xf32>
    tpu.vector_store %arg6[%c32_30, %c0_31], %54 {strides = array<i32>} : memref<36x512xf32, #tpu.memory_space<vmem>>, vector<4x256xf32>,
    %c1 = arith.constant 1 : index
    %c0_32 = arith.constant 0 : index
    %c0_33 = arith.constant 0 : index
    %56 = vector.load %arg1[%c1, %c0_32, %c0_33] : memref<2x4x256xf32, #tpu.memory_space<vmem>>, vector<1x4x256xf32>
    %57 = vector.shape_cast %56 : vector<1x4x256xf32> to vector<4x256xf32>
    %c0_34 = arith.constant 0 : index
    %c32_35 = arith.constant 32 : index
    %58 = vector.load %arg5[%c0_34, %c32_35] : memref<4x320xf32, #tpu.memory_space<vmem>>, vector<4x256xf32>
    tpu.vector_store %arg5[%c0_34, %c32_35], %57 {strides = array<i32>} : memref<4x320xf32, #tpu.memory_space<vmem>>, vector<4x256xf32>,
    %59 = vector.extract_strided_slice %57 {offsets = [0, 16], sizes = [4, 16], strides = [1, 1]} : vector<4x256xf32> to vector<4x16xf32>
    %c0_36 = arith.constant 0 : index
    %c16_37 = arith.constant 16 : index
    %60 = vector.load %arg5[%c0_36, %c16_37] : memref<4x320xf32, #tpu.memory_space<vmem>>, vector<4x16xf32>
    tpu.vector_store %arg5[%c0_36, %c16_37], %59 {strides = array<i32>} : memref<4x320xf32, #tpu.memory_space<vmem>>, vector<4x16xf32>,
    %61 = vector.extract_strided_slice %57 {offsets = [0, 224], sizes = [4, 16], strides = [1, 1]} : vector<4x256xf32> to vector<4x16xf32>
    %c0_38 = arith.constant 0 : index
    %c288_39 = arith.constant 288 : index
    %62 = vector.load %arg5[%c0_38, %c288_39] : memref<4x320xf32, #tpu.memory_space<vmem>>, vector<4x16xf32>
    tpu.vector_store %arg5[%c0_38, %c288_39], %61 {strides = array<i32>} : memref<4x320xf32, #tpu.memory_space<vmem>>, vector<4x16xf32>,
    %c0_40 = arith.constant 0 : index
    %c15_41 = arith.constant 15 : index
    %63 = vector.load %arg5[%c0_40, %c15_41] : memref<4x320xf32, #tpu.memory_space<vmem>>, vector<4x256xf32>
    %c0_42 = arith.constant 0 : index
    %c16_43 = arith.constant 16 : index
    %64 = vector.load %arg5[%c0_42, %c16_43] : memref<4x320xf32, #tpu.memory_space<vmem>>, vector<4x256xf32>
    %c0_44 = arith.constant 0 : index
    %c17_45 = arith.constant 17 : index
    %65 = vector.load %arg5[%c0_44, %c17_45] : memref<4x320xf32, #tpu.memory_space<vmem>>, vector<4x256xf32>
    %66 = arith.select %29, %65, %63 : vector<4x256xi1>, vector<4x256xf32>
    %c0_46 = arith.constant 0 : index
    %c256 = arith.constant 256 : index
    %67 = vector.load %arg6[%c0_46, %c256] : memref<36x512xf32, #tpu.memory_space<vmem>>, vector<4x256xf32>
    tpu.vector_store %arg6[%c0_46, %c256], %66 {strides = array<i32>} : memref<36x512xf32, #tpu.memory_space<vmem>>, vector<4x256xf32>,
    %c4_47 = arith.constant 4 : index
    %c256_48 = arith.constant 256 : index
    %68 = vector.load %arg6[%c4_47, %c256_48] : memref<36x512xf32, #tpu.memory_space<vmem>>, vector<4x256xf32>
    tpu.vector_store %arg6[%c4_47, %c256_48], %64 {strides = array<i32>} : memref<36x512xf32, #tpu.memory_space<vmem>>, vector<4x256xf32>,
    %69 = arith.select %31, %63, %65 : vector<4x256xi1>, vector<4x256xf32>
    %c8_49 = arith.constant 8 : index
    %c256_50 = arith.constant 256 : index
    %70 = vector.load %arg6[%c8_49, %c256_50] : memref<36x512xf32, #tpu.memory_space<vmem>>, vector<4x256xf32>
    tpu.vector_store %arg6[%c8_49, %c256_50], %69 {strides = array<i32>} : memref<36x512xf32, #tpu.memory_space<vmem>>, vector<4x256xf32>,
    %c0_51 = arith.constant 0 : index
    %c31_52 = arith.constant 31 : index
    %71 = vector.load %arg5[%c0_51, %c31_52] : memref<4x320xf32, #tpu.memory_space<vmem>>, vector<4x256xf32>
    %c0_53 = arith.constant 0 : index
    %c32_54 = arith.constant 32 : index
    %72 = vector.load %arg5[%c0_53, %c32_54] : memref<4x320xf32, #tpu.memory_space<vmem>>, vector<4x256xf32>
    %c0_55 = arith.constant 0 : index
    %c33_56 = arith.constant 33 : index
    %73 = vector.load %arg5[%c0_55, %c33_56] : memref<4x320xf32, #tpu.memory_space<vmem>>, vector<4x256xf32>
    %74 = arith.select %29, %73, %71 : vector<4x256xi1>, vector<4x256xf32>
    %c12_57 = arith.constant 12 : index
    %c256_58 = arith.constant 256 : index
    %75 = vector.load %arg6[%c12_57, %c256_58] : memref<36x512xf32, #tpu.memory_space<vmem>>, vector<4x256xf32>
    tpu.vector_store %arg6[%c12_57, %c256_58], %74 {strides = array<i32>} : memref<36x512xf32, #tpu.memory_space<vmem>>, vector<4x256xf32>,
    %c16_59 = arith.constant 16 : index
    %c256_60 = arith.constant 256 : index
    %76 = vector.load %arg6[%c16_59, %c256_60] : memref<36x512xf32, #tpu.memory_space<vmem>>, vector<4x256xf32>
    tpu.vector_store %arg6[%c16_59, %c256_60], %72 {strides = array<i32>} : memref<36x512xf32, #tpu.memory_space<vmem>>, vector<4x256xf32>,
    %77 = arith.select %31, %71, %73 : vector<4x256xi1>, vector<4x256xf32>
    %c20_61 = arith.constant 20 : index
    %c256_62 = arith.constant 256 : index
    %78 = vector.load %arg6[%c20_61, %c256_62] : memref<36x512xf32, #tpu.memory_space<vmem>>, vector<4x256xf32>
    tpu.vector_store %arg6[%c20_61, %c256_62], %77 {strides = array<i32>} : memref<36x512xf32, #tpu.memory_space<vmem>>, vector<4x256xf32>,
    %c0_63 = arith.constant 0 : index
    %c47_64 = arith.constant 47 : index
    %79 = vector.load %arg5[%c0_63, %c47_64] : memref<4x320xf32, #tpu.memory_space<vmem>>, vector<4x256xf32>
    %c0_65 = arith.constant 0 : index
    %c48_66 = arith.constant 48 : index
    %80 = vector.load %arg5[%c0_65, %c48_66] : memref<4x320xf32, #tpu.memory_space<vmem>>, vector<4x256xf32>
    %c0_67 = arith.constant 0 : index
    %c49_68 = arith.constant 49 : index
    %81 = vector.load %arg5[%c0_67, %c49_68] : memref<4x320xf32, #tpu.memory_space<vmem>>, vector<4x256xf32>
    %82 = arith.select %29, %81, %79 : vector<4x256xi1>, vector<4x256xf32>
    %c24_69 = arith.constant 24 : index
    %c256_70 = arith.constant 256 : index
    %83 = vector.load %arg6[%c24_69, %c256_70] : memref<36x512xf32, #tpu.memory_space<vmem>>, vector<4x256xf32>
    tpu.vector_store %arg6[%c24_69, %c256_70], %82 {strides = array<i32>} : memref<36x512xf32, #tpu.memory_space<vmem>>, vector<4x256xf32>,
    %c28_71 = arith.constant 28 : index
    %c256_72 = arith.constant 256 : index
    %84 = vector.load %arg6[%c28_71, %c256_72] : memref<36x512xf32, #tpu.memory_space<vmem>>, vector<4x256xf32>
    tpu.vector_store %arg6[%c28_71, %c256_72], %80 {strides = array<i32>} : memref<36x512xf32, #tpu.memory_space<vmem>>, vector<4x256xf32>,
    %85 = arith.select %31, %79, %81 : vector<4x256xi1>, vector<4x256xf32>
    %c32_73 = arith.constant 32 : index
    %c256_74 = arith.constant 256 : index
    %86 = vector.load %arg6[%c32_73, %c256_74] : memref<36x512xf32, #tpu.memory_space<vmem>>, vector<4x256xf32>
    tpu.vector_store %arg6[%c32_73, %c256_74], %85 {strides = array<i32>} : memref<36x512xf32, #tpu.memory_space<vmem>>, vector<4x256xf32>,
    %c0_75 = arith.constant 0 : index
    %c0_76 = arith.constant 0 : index
    %87 = vector.load %arg2[%c0_75, %c0_76] : memref<4x36xf32, #tpu.memory_space<vmem>>, vector<4x36xf32>
    %c0_77 = arith.constant 0 : index
    %c0_78 = arith.constant 0 : index
    %88 = vector.load %arg6[%c0_77, %c0_78] : memref<36x512xf32, #tpu.memory_space<vmem>>, vector<36x512xf32>
    %cst = arith.constant dense<0.000000e+00> : vector<4x512xf32>
    %89 = tpu.matmul %87, %88, %cst {dimension_numbers = #tpu.dot_dimension_numbers<[1], [0], [0], [1], [0, 0, 1, 1], [], []>} : vector<4x36xf32>, vector<36x512xf32>, vector<4x512xf32> -> vector<4x512xf32>
    %cst_79 = arith.constant 0.000000e+00 : f32
    %90 = vector.broadcast %cst_79 : f32 to vector<4x512xf32>
    %91 = arith.cmpf oge, %89, %90 : vector<4x512xf32>
    %cst_80 = arith.constant 2.000000e-01 : f32
    %92 = vector.broadcast %cst_80 : f32 to vector<4x512xf32>
    %93 = arith.mulf %92, %89 : vector<4x512xf32>
    %94 = arith.select %91, %89, %93 : vector<4x512xi1>, vector<4x512xf32>
    %95 = vector.extract_strided_slice %94 {offsets = [0, 0], sizes = [4, 256], strides = [1, 1]} : vector<4x512xf32> to vector<4x256xf32>
    %c0_81 = arith.constant 0 : index
    %c32_82 = arith.constant 32 : index
    %96 = vector.load %arg5[%c0_81, %c32_82] : memref<4x320xf32, #tpu.memory_space<vmem>>, vector<4x256xf32>
    tpu.vector_store %arg5[%c0_81, %c32_82], %95 {strides = array<i32>} : memref<4x320xf32, #tpu.memory_space<vmem>>, vector<4x256xf32>,
    %97 = vector.extract_strided_slice %95 {offsets = [0, 16], sizes = [4, 16], strides = [1, 1]} : vector<4x256xf32> to vector<4x16xf32>
    %c0_83 = arith.constant 0 : index
    %c16_84 = arith.constant 16 : index
    %98 = vector.load %arg5[%c0_83, %c16_84] : memref<4x320xf32, #tpu.memory_space<vmem>>, vector<4x16xf32>
    tpu.vector_store %arg5[%c0_83, %c16_84], %97 {strides = array<i32>} : memref<4x320xf32, #tpu.memory_space<vmem>>, vector<4x16xf32>,
    %99 = vector.extract_strided_slice %95 {offsets = [0, 224], sizes = [4, 16], strides = [1, 1]} : vector<4x256xf32> to vector<4x16xf32>
    %c0_85 = arith.constant 0 : index
    %c288_86 = arith.constant 288 : index
    %100 = vector.load %arg5[%c0_85, %c288_86] : memref<4x320xf32, #tpu.memory_space<vmem>>, vector<4x16xf32>
    tpu.vector_store %arg5[%c0_85, %c288_86], %99 {strides = array<i32>} : memref<4x320xf32, #tpu.memory_space<vmem>>, vector<4x16xf32>,
    %c0_87 = arith.constant 0 : index
    %c15_88 = arith.constant 15 : index
    %101 = vector.load %arg5[%c0_87, %c15_88] : memref<4x320xf32, #tpu.memory_space<vmem>>, vector<4x256xf32>
    %c0_89 = arith.constant 0 : index
    %c16_90 = arith.constant 16 : index
    %102 = vector.load %arg5[%c0_89, %c16_90] : memref<4x320xf32, #tpu.memory_space<vmem>>, vector<4x256xf32>
    %c0_91 = arith.constant 0 : index
    %c17_92 = arith.constant 17 : index
    %103 = vector.load %arg5[%c0_91, %c17_92] : memref<4x320xf32, #tpu.memory_space<vmem>>, vector<4x256xf32>
    %104 = arith.select %29, %103, %101 : vector<4x256xi1>, vector<4x256xf32>
    %c0_93 = arith.constant 0 : index
    %c0_94 = arith.constant 0 : index
    %105 = vector.load %arg6[%c0_93, %c0_94] : memref<36x512xf32, #tpu.memory_space<vmem>>, vector<4x256xf32>
    tpu.vector_store %arg6[%c0_93, %c0_94], %104 {strides = array<i32>} : memref<36x512xf32, #tpu.memory_space<vmem>>, vector<4x256xf32>,
    %c4_95 = arith.constant 4 : index
    %c0_96 = arith.constant 0 : index
    %106 = vector.load %arg6[%c4_95, %c0_96] : memref<36x512xf32, #tpu.memory_space<vmem>>, vector<4x256xf32>
    tpu.vector_store %arg6[%c4_95, %c0_96], %102 {strides = array<i32>} : memref<36x512xf32, #tpu.memory_space<vmem>>, vector<4x256xf32>,
    %107 = arith.select %31, %101, %103 : vector<4x256xi1>, vector<4x256xf32>
    %c8_97 = arith.constant 8 : index
    %c0_98 = arith.constant 0 : index
    %108 = vector.load %arg6[%c8_97, %c0_98] : memref<36x512xf32, #tpu.memory_space<vmem>>, vector<4x256xf32>
    tpu.vector_store %arg6[%c8_97, %c0_98], %107 {strides = array<i32>} : memref<36x512xf32, #tpu.memory_space<vmem>>, vector<4x256xf32>,
    %c0_99 = arith.constant 0 : index
    %c31_100 = arith.constant 31 : index
    %109 = vector.load %arg5[%c0_99, %c31_100] : memref<4x320xf32, #tpu.memory_space<vmem>>, vector<4x256xf32>
    %c0_101 = arith.constant 0 : index
    %c32_102 = arith.constant 32 : index
    %110 = vector.load %arg5[%c0_101, %c32_102] : memref<4x320xf32, #tpu.memory_space<vmem>>, vector<4x256xf32>
    %c0_103 = arith.constant 0 : index
    %c33_104 = arith.constant 33 : index
    %111 = vector.load %arg5[%c0_103, %c33_104] : memref<4x320xf32, #tpu.memory_space<vmem>>, vector<4x256xf32>
    %112 = arith.select %29, %111, %109 : vector<4x256xi1>, vector<4x256xf32>
    %c12_105 = arith.constant 12 : index
    %c0_106 = arith.constant 0 : index
    %113 = vector.load %arg6[%c12_105, %c0_106] : memref<36x512xf32, #tpu.memory_space<vmem>>, vector<4x256xf32>
    tpu.vector_store %arg6[%c12_105, %c0_106], %112 {strides = array<i32>} : memref<36x512xf32, #tpu.memory_space<vmem>>, vector<4x256xf32>,
    %c16_107 = arith.constant 16 : index
    %c0_108 = arith.constant 0 : index
    %114 = vector.load %arg6[%c16_107, %c0_108] : memref<36x512xf32, #tpu.memory_space<vmem>>, vector<4x256xf32>
    tpu.vector_store %arg6[%c16_107, %c0_108], %110 {strides = array<i32>} : memref<36x512xf32, #tpu.memory_space<vmem>>, vector<4x256xf32>,
    %115 = arith.select %31, %109, %111 : vector<4x256xi1>, vector<4x256xf32>
    %c20_109 = arith.constant 20 : index
    %c0_110 = arith.constant 0 : index
    %116 = vector.load %arg6[%c20_109, %c0_110] : memref<36x512xf32, #tpu.memory_space<vmem>>, vector<4x256xf32>
    tpu.vector_store %arg6[%c20_109, %c0_110], %115 {strides = array<i32>} : memref<36x512xf32, #tpu.memory_space<vmem>>, vector<4x256xf32>,
    %c0_111 = arith.constant 0 : index
    %c47_112 = arith.constant 47 : index
    %117 = vector.load %arg5[%c0_111, %c47_112] : memref<4x320xf32, #tpu.memory_space<vmem>>, vector<4x256xf32>
    %c0_113 = arith.constant 0 : index
    %c48_114 = arith.constant 48 : index
    %118 = vector.load %arg5[%c0_113, %c48_114] : memref<4x320xf32, #tpu.memory_space<vmem>>, vector<4x256xf32>
    %c0_115 = arith.constant 0 : index
    %c49_116 = arith.constant 49 : index
    %119 = vector.load %arg5[%c0_115, %c49_116] : memref<4x320xf32, #tpu.memory_space<vmem>>, vector<4x256xf32>
    %120 = arith.select %29, %119, %117 : vector<4x256xi1>, vector<4x256xf32>
    %c24_117 = arith.constant 24 : index
    %c0_118 = arith.constant 0 : index
    %121 = vector.load %arg6[%c24_117, %c0_118] : memref<36x512xf32, #tpu.memory_space<vmem>>, vector<4x256xf32>
    tpu.vector_store %arg6[%c24_117, %c0_118], %120 {strides = array<i32>} : memref<36x512xf32, #tpu.memory_space<vmem>>, vector<4x256xf32>,
    %c28_119 = arith.constant 28 : index
    %c0_120 = arith.constant 0 : index
    %122 = vector.load %arg6[%c28_119, %c0_120] : memref<36x512xf32, #tpu.memory_space<vmem>>, vector<4x256xf32>
    tpu.vector_store %arg6[%c28_119, %c0_120], %118 {strides = array<i32>} : memref<36x512xf32, #tpu.memory_space<vmem>>, vector<4x256xf32>,
    %123 = arith.select %31, %117, %119 : vector<4x256xi1>, vector<4x256xf32>
    %c32_121 = arith.constant 32 : index
    %c0_122 = arith.constant 0 : index
    %124 = vector.load %arg6[%c32_121, %c0_122] : memref<36x512xf32, #tpu.memory_space<vmem>>, vector<4x256xf32>
    tpu.vector_store %arg6[%c32_121, %c0_122], %123 {strides = array<i32>} : memref<36x512xf32, #tpu.memory_space<vmem>>, vector<4x256xf32>,
    %125 = vector.extract_strided_slice %94 {offsets = [0, 256], sizes = [4, 256], strides = [1, 1]} : vector<4x512xf32> to vector<4x256xf32>
    %c0_123 = arith.constant 0 : index
    %c32_124 = arith.constant 32 : index
    %126 = vector.load %arg5[%c0_123, %c32_124] : memref<4x320xf32, #tpu.memory_space<vmem>>, vector<4x256xf32>
    tpu.vector_store %arg5[%c0_123, %c32_124], %125 {strides = array<i32>} : memref<4x320xf32, #tpu.memory_space<vmem>>, vector<4x256xf32>,
    %127 = vector.extract_strided_slice %125 {offsets = [0, 16], sizes = [4, 16], strides = [1, 1]} : vector<4x256xf32> to vector<4x16xf32>
    %c0_125 = arith.constant 0 : index
    %c16_126 = arith.constant 16 : index
    %128 = vector.load %arg5[%c0_125, %c16_126] : memref<4x320xf32, #tpu.memory_space<vmem>>, vector<4x16xf32>
    tpu.vector_store %arg5[%c0_125, %c16_126], %127 {strides = array<i32>} : memref<4x320xf32, #tpu.memory_space<vmem>>, vector<4x16xf32>,
    %129 = vector.extract_strided_slice %125 {offsets = [0, 224], sizes = [4, 16], strides = [1, 1]} : vector<4x256xf32> to vector<4x16xf32>
    %c0_127 = arith.constant 0 : index
    %c288_128 = arith.constant 288 : index
    %130 = vector.load %arg5[%c0_127, %c288_128] : memref<4x320xf32, #tpu.memory_space<vmem>>, vector<4x16xf32>
    tpu.vector_store %arg5[%c0_127, %c288_128], %129 {strides = array<i32>} : memref<4x320xf32, #tpu.memory_space<vmem>>, vector<4x16xf32>,
    %c0_129 = arith.constant 0 : index
    %c15_130 = arith.constant 15 : index
    %131 = vector.load %arg5[%c0_129, %c15_130] : memref<4x320xf32, #tpu.memory_space<vmem>>, vector<4x256xf32>
    %c0_131 = arith.constant 0 : index
    %c16_132 = arith.constant 16 : index
    %132 = vector.load %arg5[%c0_131, %c16_132] : memref<4x320xf32, #tpu.memory_space<vmem>>, vector<4x256xf32>
    %c0_133 = arith.constant 0 : index
    %c17_134 = arith.constant 17 : index
    %133 = vector.load %arg5[%c0_133, %c17_134] : memref<4x320xf32, #tpu.memory_space<vmem>>, vector<4x256xf32>
    %134 = arith.select %29, %133, %131 : vector<4x256xi1>, vector<4x256xf32>
    %c0_135 = arith.constant 0 : index
    %c256_136 = arith.constant 256 : index
    %135 = vector.load %arg6[%c0_135, %c256_136] : memref<36x512xf32, #tpu.memory_space<vmem>>, vector<4x256xf32>
    tpu.vector_store %arg6[%c0_135, %c256_136], %134 {strides = array<i32>} : memref<36x512xf32, #tpu.memory_space<vmem>>, vector<4x256xf32>,
    %c4_137 = arith.constant 4 : index
    %c256_138 = arith.constant 256 : index
    %136 = vector.load %arg6[%c4_137, %c256_138] : memref<36x512xf32, #tpu.memory_space<vmem>>, vector<4x256xf32>
    tpu.vector_store %arg6[%c4_137, %c256_138], %132 {strides = array<i32>} : memref<36x512xf32, #tpu.memory_space<vmem>>, vector<4x256xf32>,
    %137 = arith.select %31, %131, %133 : vector<4x256xi1>, vector<4x256xf32>
    %c8_139 = arith.constant 8 : index
    %c256_140 = arith.constant 256 : index
    %138 = vector.load %arg6[%c8_139, %c256_140] : memref<36x512xf32, #tpu.memory_space<vmem>>, vector<4x256xf32>
    tpu.vector_store %arg6[%c8_139, %c256_140], %137 {strides = array<i32>} : memref<36x512xf32, #tpu.memory_space<vmem>>, vector<4x256xf32>,
    %c0_141 = arith.constant 0 : index
    %c31_142 = arith.constant 31 : index
    %139 = vector.load %arg5[%c0_141, %c31_142] : memref<4x320xf32, #tpu.memory_space<vmem>>, vector<4x256xf32>
    %c0_143 = arith.constant 0 : index
    %c32_144 = arith.constant 32 : index
    %140 = vector.load %arg5[%c0_143, %c32_144] : memref<4x320xf32, #tpu.memory_space<vmem>>, vector<4x256xf32>
    %c0_145 = arith.constant 0 : index
    %c33_146 = arith.constant 33 : index
    %141 = vector.load %arg5[%c0_145, %c33_146] : memref<4x320xf32, #tpu.memory_space<vmem>>, vector<4x256xf32>
    %142 = arith.select %29, %141, %139 : vector<4x256xi1>, vector<4x256xf32>
    %c12_147 = arith.constant 12 : index
    %c256_148 = arith.constant 256 : index
    %143 = vector.load %arg6[%c12_147, %c256_148] : memref<36x512xf32, #tpu.memory_space<vmem>>, vector<4x256xf32>
    tpu.vector_store %arg6[%c12_147, %c256_148], %142 {strides = array<i32>} : memref<36x512xf32, #tpu.memory_space<vmem>>, vector<4x256xf32>,
    %c16_149 = arith.constant 16 : index
    %c256_150 = arith.constant 256 : index
    %144 = vector.load %arg6[%c16_149, %c256_150] : memref<36x512xf32, #tpu.memory_space<vmem>>, vector<4x256xf32>
    tpu.vector_store %arg6[%c16_149, %c256_150], %140 {strides = array<i32>} : memref<36x512xf32, #tpu.memory_space<vmem>>, vector<4x256xf32>,
    %145 = arith.select %31, %139, %141 : vector<4x256xi1>, vector<4x256xf32>
    %c20_151 = arith.constant 20 : index
    %c256_152 = arith.constant 256 : index
    %146 = vector.load %arg6[%c20_151, %c256_152] : memref<36x512xf32, #tpu.memory_space<vmem>>, vector<4x256xf32>
    tpu.vector_store %arg6[%c20_151, %c256_152], %145 {strides = array<i32>} : memref<36x512xf32, #tpu.memory_space<vmem>>, vector<4x256xf32>,
    %c0_153 = arith.constant 0 : index
    %c47_154 = arith.constant 47 : index
    %147 = vector.load %arg5[%c0_153, %c47_154] : memref<4x320xf32, #tpu.memory_space<vmem>>, vector<4x256xf32>
    %c0_155 = arith.constant 0 : index
    %c48_156 = arith.constant 48 : index
    %148 = vector.load %arg5[%c0_155, %c48_156] : memref<4x320xf32, #tpu.memory_space<vmem>>, vector<4x256xf32>
    %c0_157 = arith.constant 0 : index
    %c49_158 = arith.constant 49 : index
    %149 = vector.load %arg5[%c0_157, %c49_158] : memref<4x320xf32, #tpu.memory_space<vmem>>, vector<4x256xf32>
    %150 = arith.select %29, %149, %147 : vector<4x256xi1>, vector<4x256xf32>
    %c24_159 = arith.constant 24 : index
    %c256_160 = arith.constant 256 : index
    %151 = vector.load %arg6[%c24_159, %c256_160] : memref<36x512xf32, #tpu.memory_space<vmem>>, vector<4x256xf32>
    tpu.vector_store %arg6[%c24_159, %c256_160], %150 {strides = array<i32>} : memref<36x512xf32, #tpu.memory_space<vmem>>, vector<4x256xf32>,
    %c28_161 = arith.constant 28 : index
    %c256_162 = arith.constant 256 : index
    %152 = vector.load %arg6[%c28_161, %c256_162] : memref<36x512xf32, #tpu.memory_space<vmem>>, vector<4x256xf32>
    tpu.vector_store %arg6[%c28_161, %c256_162], %148 {strides = array<i32>} : memref<36x512xf32, #tpu.memory_space<vmem>>, vector<4x256xf32>,
    %153 = arith.select %31, %147, %149 : vector<4x256xi1>, vector<4x256xf32>
    %c32_163 = arith.constant 32 : index
    %c256_164 = arith.constant 256 : index
    %154 = vector.load %arg6[%c32_163, %c256_164] : memref<36x512xf32, #tpu.memory_space<vmem>>, vector<4x256xf32>
    tpu.vector_store %arg6[%c32_163, %c256_164], %153 {strides = array<i32>} : memref<36x512xf32, #tpu.memory_space<vmem>>, vector<4x256xf32>,
    %c0_165 = arith.constant 0 : index
    %c0_166 = arith.constant 0 : index
    %155 = vector.load %arg3[%c0_165, %c0_166] : memref<4x36xf32, #tpu.memory_space<vmem>>, vector<4x36xf32>
    %c0_167 = arith.constant 0 : index
    %c0_168 = arith.constant 0 : index
    %156 = vector.load %arg6[%c0_167, %c0_168] : memref<36x512xf32, #tpu.memory_space<vmem>>, vector<36x512xf32>
    %cst_169 = arith.constant dense<0.000000e+00> : vector<4x512xf32>
    %157 = tpu.matmul %155, %156, %cst_169 {dimension_numbers = #tpu.dot_dimension_numbers<[1], [0], [0], [1], [0, 0, 1, 1], [], []>} : vector<4x36xf32>, vector<36x512xf32>, vector<4x512xf32> -> vector<4x512xf32>
    %c0_170 = arith.constant 0 : index
    %c0_171 = arith.constant 0 : index
    %c0_172 = arith.constant 0 : index
    %158 = vector.load %arg1[%c0_170, %c0_171, %c0_172] : memref<2x4x256xf32, #tpu.memory_space<vmem>>, vector<1x4x256xf32>
    %159 = vector.shape_cast %158 : vector<1x4x256xf32> to vector<4x256xf32>
    %160 = vector.extract_strided_slice %157 {offsets = [0, 0], sizes = [4, 256], strides = [1, 1]} : vector<4x512xf32> to vector<4x256xf32>
    %161 = arith.addf %159, %160 : vector<4x256xf32>
    %c0_173 = arith.constant 0 : index
    %c0_174 = arith.constant 0 : index
    %c0_175 = arith.constant 0 : index
    %162 = vector.load %arg4[%c0_173, %c0_174, %c0_175] : memref<2x4x256xf32, #tpu.memory_space<vmem>>, vector<1x4x256xf32>
    %163 = vector.shape_cast %162 : vector<1x4x256xf32> to vector<4x256xf32>
    %164 = vector.shape_cast %161 : vector<4x256xf32> to vector<1x4x256xf32>
    tpu.vector_store %arg4[%c0_173, %c0_174, %c0_175], %164 {strides = array<i32>} : memref<2x4x256xf32, #tpu.memory_space<vmem>>, vector<1x4x256xf32>,
    %c1_176 = arith.constant 1 : index
    %c0_177 = arith.constant 0 : index
    %c0_178 = arith.constant 0 : index
    %165 = vector.load %arg1[%c1_176, %c0_177, %c0_178] : memref<2x4x256xf32, #tpu.memory_space<vmem>>, vector<1x4x256xf32>
    %166 = vector.shape_cast %165 : vector<1x4x256xf32> to vector<4x256xf32>
    %167 = vector.extract_strided_slice %157 {offsets = [0, 256], sizes = [4, 256], strides = [1, 1]} : vector<4x512xf32> to vector<4x256xf32>
    %168 = arith.addf %166, %167 : vector<4x256xf32>
    %c1_179 = arith.constant 1 : index
    %c0_180 = arith.constant 0 : index
    %c0_181 = arith.constant 0 : index
    %169 = vector.load %arg4[%c1_179, %c0_180, %c0_181] : memref<2x4x256xf32, #tpu.memory_space<vmem>>, vector<1x4x256xf32>
    %170 = vector.shape_cast %169 : vector<1x4x256xf32> to vector<4x256xf32>
    %171 = vector.shape_cast %168 : vector<4x256xf32> to vector<1x4x256xf32>
    tpu.vector_store %arg4[%c1_179, %c0_180, %c0_181], %171 {strides = array<i32>} : memref<2x4x256xf32, #tpu.memory_space<vmem>>, vector<1x4x256xf32>,
    return
  }
  func.func @transform_0(%arg0: i32) -> (i32, i32, i32) {
    %c0_i32 = arith.constant 0 : i32
    %c0_i32_0 = arith.constant 0 : i32
    %c0_i32_1 = arith.constant 0 : i32
    return %arg0, %c0_i32, %c0_i32_0 : i32, i32, i32
  }
  func.func @transform_1(%arg0: i32) -> (i32, i32) {
    %c0_i32 = arith.constant 0 : i32
    %c0_i32_0 = arith.constant 0 : i32
    %c0_i32_1 = arith.constant 0 : i32
    return %c0_i32, %c0_i32_0 : i32, i32
  }
  func.func @transform_2(%arg0: i32) -> (i32, i32) {
    %c0_i32 = arith.constant 0 : i32
    %c0_i32_0 = arith.constant 0 : i32
    %c0_i32_1 = arith.constant 0 : i32
    return %c0_i32, %c0_i32_0 : i32, i32
  }
  func.func @transform_3(%arg0: i32) -> (i32, i32, i32) {
    %c0_i32 = arith.constant 0 : i32
    %c0_i32_0 = arith.constant 0 : i32
    %c0_i32_1 = arith.constant 0 : i32
    return %arg0, %c0_i32, %c0_i32_0 : i32, i32, i32
  }
}

</mosaic_0001>

<llo_original>
// kernel: tpu_custom_call.1
$region0: #{tpu_custom_call.1}
  #allocation0 [shape = 'u32[]', space=smem, size = 0x4, offset = 0x4, fixed_abs, tag = 'smem constant byte address 0x4 - core index']
  #allocation1 [shape = 'u32[144,128]{1,0:T(1,128)}', space=vmem, size = 0x12000, scoped, tag = 'internal scratch']
  #allocation2 [shape = 'f32[4,320]{1,0:T(4,128)}', space=vmem, size = 0x1800, scoped, tag = 'scratch operand']
  #allocation3 [shape = 'f32[36,512]{1,0:T(8,128)}', space=vmem, size = 0x14000, scoped, tag = 'scratch operand']
  %s0 = inlined_call_operand.hbm [shape: f32[2,4,256], index: 0, kind: input, shape index: {}]
  %s1 = inlined_call_operand.hbm [shape: f32[4,36], index: 1, kind: input, shape index: {}]
  %s2 = inlined_call_operand.hbm [shape: f32[4,36], index: 2, kind: input, shape index: {}]
  %s3 = inlined_call_operand.hbm [shape: f32[2,4,256], index: 3, kind: output, shape index: {}]
  %s4 = sld [smem:[#allocation0]]
  $region34: #{tpu_custom_call.1} parent=0
    _
  %s6 = ssub.s32 1, %s4
  %s7 = scalar_select 0, %s6, %s4
  $region1: #{tpu_custom_call.1} parent=0
    #allocation4 [shape = 'u8[8192]{0}', space=vmem, size = 0x2000, scoped, tag = 'input window, operand 0, single buffered']
    #allocation5 [shape = 's32[1]{0}', space=sflag, size = 0x4, scoped, tag = 'scoped memory for tpu_custom_call.1']
    #allocation6 [shape = 's32[1]{0}', space=sflag, size = 0x4, scoped, tag = 'scoped memory for tpu_custom_call.1']
    #allocation7 [shape = 'u8[2048]{0}', space=vmem, size = 0x800, scoped, tag = 'input window, operand 1, single buffered']
    #allocation8 [shape = 's32[1]{0}', space=sflag, size = 0x4, scoped, tag = 'scoped memory for tpu_custom_call.1']
    #allocation9 [shape = 'u8[2048]{0}', space=vmem, size = 0x800, scoped, tag = 'input window, operand 2, single buffered']
    #allocation10 [shape = 'u8[8192]{0}', space=vmem, size = 0x2000, scoped, tag = 'output window, operand 0, single buffered']
    %8 = vsyncpa [#allocation5], 0
    %9 = vsyncpa [#allocation8], 0
    %10 = vsyncpa [#allocation6], 0
    // Predicated region
    $region2: #{tpu_custom_call.1} parent=1 // pred_check
      _
    $region3: #{tpu_custom_call.1} parent=1 // pred_check_branch
      %12 = sbr.rel (0) target = $region5
    $region4: #{tpu_custom_call.1} parent=1 // pred_region
      %s14 = ssub.s32 256, 256
      %15 = vsyncadd [#allocation5], %s14
      %s16 = sshll.u32 [#allocation4], 4
      %s17 = int_to_ptr.vmem [resolvable:$true] %s16
      %22 = dma.hbm_to_vmem [thread:$0]  %s0, 256, %s17, [#allocation5], 128, 128, 8
    $region5: #{tpu_custom_call.1} parent=1 // pred_fallthru
      _
    // Predicated region
    $region6: #{tpu_custom_call.1} parent=1 // pred_check
      _
    $region7: #{tpu_custom_call.1} parent=1 // pred_check_branch
      %24 = sbr.rel (0) target = $region9
    $region8: #{tpu_custom_call.1} parent=1 // pred_region
      %s26 = ssub.s32 64, 64
      %27 = vsyncadd [#allocation8], %s26
      %s29 = sshll.u32 [#allocation7], 4
      %s30 = int_to_ptr.vmem [resolvable:$true] %s29
      %32 = dma.hbm_to_vmem [thread:$0]  %s1, 64, %s30, [#allocation8]
    $region9: #{tpu_custom_call.1} parent=1 // pred_fallthru
      _
    // Predicated region
    $region10: #{tpu_custom_call.1} parent=1 // pred_check
      _
    $region11: #{tpu_custom_call.1} parent=1 // pred_check_branch
      %34 = sbr.rel (0) target = $region13
    $region12: #{tpu_custom_call.1} parent=1 // pred_region
      %s36 = ssub.s32 64, 64
      %37 = vsyncadd [#allocation8], %s36
      %s39 = sshll.u32 [#allocation9], 4
      %s40 = int_to_ptr.vmem [resolvable:$true] %s39
      %42 = dma.hbm_to_vmem [thread:$0]  %s2, 64, %s40, [#allocation8]
    $region13: #{tpu_custom_call.1} parent=1 // pred_fallthru
      _
    // Predicated region
    $region14: #{tpu_custom_call.1} parent=1 // pred_check
      _
    $region15: #{tpu_custom_call.1} parent=1 // pred_check_branch
      %44 = sbr.rel (0) target = $region17
    $region16: #{tpu_custom_call.1} parent=1 // pred_region
      %45 = dma.done [#allocation5], 256
    $region17: #{tpu_custom_call.1} parent=1 // pred_fallthru
      _
    // Predicated region
    $region18: #{tpu_custom_call.1} parent=1 // pred_check
      _
    $region19: #{tpu_custom_call.1} parent=1 // pred_check_branch
      %47 = sbr.rel (0) target = $region21
    $region20: #{tpu_custom_call.1} parent=1 // pred_region
      %48 = dma.done [#allocation8], 64
    $region21: #{tpu_custom_call.1} parent=1 // pred_fallthru
      _
    // Predicated region
    $region22: #{tpu_custom_call.1} parent=1 // pred_check
      _
    $region23: #{tpu_custom_call.1} parent=1 // pred_check_branch
      %50 = sbr.rel (0) target = $region25
    $region24: #{tpu_custom_call.1} parent=1 // pred_region
      %51 = dma.done [#allocation8], 64
    $region25: #{tpu_custom_call.1} parent=1 // pred_fallthru
      _
    %v52 = vlaneseq
    %v53 = vand.u32 %v52, 127
    %v54 = vadd.s32 %v53, 128
    %vm55 = vcmp.lt.s32.totalorder %v53, 0
    %v56 = vsub.s32 0, %v53
    %v57 = vsel %vm55, %v56, %v53
    %v58 = vshrl.u32 %v57, 4
    %v59 = vand.u32 %v57, 15
    %v60 = vsub.s32 0, %v59
    %v61 = vsel %vm55, %v60, %v59
    %vm62 = vcmp.lt.s32.totalorder %v54, 0
    %v63 = vsub.s32 0, %v54
    %v64 = vsel %vm62, %v63, %v54
    %v65 = vshrl.u32 %v64, 4
    %v66 = vand.u32 %v64, 15
    %v67 = vsub.s32 0, %v66
    %v68 = vsel %vm62, %v67, %v66
    %vm69 = vcmp.ne.s32.totalorder %v61, 0
    %vm70 = vcmp.ne.s32.totalorder %v68, 0
    %vm71 = vcmp.lt.s32.totalorder %v61, 0
    %vm72 = vcmp.lt.s32.totalorder %v68, 0
    %vm73 = vmand %vm71, %vm69
    %vm74 = vmand %vm72, %vm70
    %v75 = vadd.s32 %v61, 16
    %v76 = vadd.s32 %v68, 16
    %v77 = vsel %vm73, %v75, %v61
    %v78 = vsel %vm74, %v76, %v68
    %vm79 = vcmp.eq.s32.totalorder %v77, 0
    %vm80 = vcmp.eq.s32.totalorder %v78, 0
    %vm81 = vcmp.eq.s32.totalorder %v77, 15
    %vm82 = vcmp.eq.s32.totalorder %v78, 15
    %v83 = vld [vmem:[#allocation4] sm:$0xff]
    %85 = vrot.lane.b32.xlu0 %v83, 32
    %v86 = vpop.permute.xlu0 %85
    %v87 = vrot.slane %v86, 4
    %vm88 = vcmask 261120
    %v89 = vsel %vm88, %v87, %v86
    %vm92 = vcmask 1043712
    %vm93 = vcmask 1047556
    %vm94 = vmor %vm93, %vm92
    %95 = vst.msk [vmem:[#allocation2] sm:$0xff] %vm94, %v89
    %vm96 = vcmask 257024
    %97 = vst.msk [vmem:[#allocation2 + $0x8] sm:$0xf] %vm96, %v87
    %vm98 = vcmask 257152
    %99 = vst.msk [vmem:[#allocation2] sm:$0xf] %vm98, %v83
    %100 = vrot.lane.b32.xlu0 %v83, 64
    %v101 = vpop.permute.xlu0 %100
    %v102 = vrot.slane %v101, 4
    %vm104 = vcmask 388352
    %105 = vst.msk [vmem:[#allocation2 + $0x8] sm:$0xf] %vm104, %v102
    %v106 = vsel %vm79, 1, 0
    %v107 = vsel %vm80, 1, 0
    %vm108 = vcmp.eq.s32.totalorder %v106, 1
    %vm109 = vcmp.eq.s32.totalorder %v107, 1
    %v110 = vsel %vm81, 1, 0
    %v111 = vsel %vm82, 1, 0
    %vm112 = vcmp.eq.s32.totalorder %v110, 1
    %vm113 = vcmp.eq.s32.totalorder %v111, 1
    %v114 = vld [vmem:[#allocation2] sm:$0xff]
    %v115 = vld [vmem:[#allocation2 + $0x8] sm:$0xf]
    %v118 = vcombine.high %v114, %v114
    %119 = vrot.lane.b32.xlu0 %v114, 111
    %v120 = vpop.permute.xlu0 %119
    %121 = vrot.lane.b32.xlu0 %v118, 111
    %v122 = vpop.permute.xlu0 %121
    %123 = vrot.lane.b32.xlu0 %v115, 111
    %v124 = vpop.permute.xlu0 %123
    %vm125 = vcmask 908288
    %v126 = vsel %vm125, %v120, %v122
    %v127 = vsel %vm125, %v122, %v124
    %130 = vrot.lane.b32.xlu0 %v114, 113
    %v131 = vpop.permute.xlu0 %130
    %132 = vrot.lane.b32.xlu0 %v118, 113
    %v133 = vpop.permute.xlu0 %132
    %134 = vrot.lane.b32.xlu0 %v115, 113
    %v135 = vpop.permute.xlu0 %134
    %vm136 = vcmask 924672
    %v137 = vsel %vm136, %v131, %v133
    %v138 = vsel %vm136, %v133, %v135
    %v141 = vsel %vm108, %v126, %v137
    %v142 = vsel %vm109, %v127, %v138
    %143 = vst [vmem:[#allocation3] sm:$0xf] %v141
    %144 = vst [vmem:[#allocation3 + $0x8] sm:$0xf] %v142
    %v145 = vcombine.low %v114, %v114
    %v146 = vcombine.low %v115, %v115
    %147 = vrot.lane.b32.xlu0 %v145, 112
    %v148 = vpop.permute.xlu0 %147
    %149 = vrot.lane.b32.xlu0 %v114, 112
    %v150 = vpop.permute.xlu0 %149
    %151 = vrot.lane.b32.xlu0 %v146, 112
    %v152 = vpop.permute.xlu0 %151
    %vm153 = vcmask 916480
    %v154 = vsel %vm153, %v148, %v150
    %v155 = vsel %vm153, %v150, %v152
    %158 = vst [vmem:[#allocation3] sm:$0xf0] %v154
    %159 = vst [vmem:[#allocation3 + $0x8] sm:$0xf0] %v155
    %v160 = vsel %vm112, %v137, %v126
    %v161 = vsel %vm113, %v138, %v127
    %162 = vst [vmem:[#allocation3 + $0x20] sm:$0xf] %v160
    %163 = vst [vmem:[#allocation3 + $0x28] sm:$0xf] %v161
    %v164 = vld [vmem:[#allocation2] sm:$0xff]
    %v165 = vld [vmem:[#allocation2 + $0x8] sm:$0xf]
    %v168 = vcombine.high %v164, %v164
    %169 = vrot.lane.b32.xlu0 %v164, 95
    %v170 = vpop.permute.xlu0 %169
    %171 = vrot.lane.b32.xlu0 %v168, 95
    %v172 = vpop.permute.xlu0 %171
    %173 = vrot.lane.b32.xlu0 %v165, 95
    %v174 = vpop.permute.xlu0 %173
    %vm175 = vcmask 777216
    %v176 = vsel %vm175, %v170, %v172
    %v177 = vsel %vm175, %v172, %v174
    %180 = vrot.lane.b32.xlu0 %v164, 97
    %v181 = vpop.permute.xlu0 %180
    %182 = vrot.lane.b32.xlu0 %v168, 97
    %v183 = vpop.permute.xlu0 %182
    %184 = vrot.lane.b32.xlu0 %v165, 97
    %v185 = vpop.permute.xlu0 %184
    %vm186 = vcmask 793600
    %v187 = vsel %vm186, %v181, %v183
    %v188 = vsel %vm186, %v183, %v185
    %v191 = vsel %vm108, %v176, %v187
    %v192 = vsel %vm109, %v177, %v188
    %v195 = vrot.slane %v191, 4
    %v196 = vrot.slane %v192, 4
    %199 = vst [vmem:[#allocation3 + $0x20] sm:$0xf0] %v195
    %200 = vst [vmem:[#allocation3 + $0x28] sm:$0xf0] %v196
    %201 = vrot.lane.b32.xlu0 %v164, 96
    %v202 = vpop.permute.xlu0 %201
    %203 = vrot.lane.b32.xlu0 %v168, 96
    %v204 = vpop.permute.xlu0 %203
    %205 = vrot.lane.b32.xlu0 %v165, 96
    %v206 = vpop.permute.xlu0 %205
    %vm207 = vcmask 785408
    %v208 = vsel %vm207, %v202, %v204
    %v209 = vsel %vm207, %v204, %v206
    %212 = vst [vmem:[#allocation3 + $0x40] sm:$0xf] %v208
    %213 = vst [vmem:[#allocation3 + $0x48] sm:$0xf] %v209
    %v214 = vsel %vm112, %v187, %v176
    %v215 = vsel %vm113, %v188, %v177
    %v218 = vrot.slane %v214, 4
    %v219 = vrot.slane %v215, 4
    %222 = vst [vmem:[#allocation3 + $0x40] sm:$0xf0] %v218
    %223 = vst [vmem:[#allocation3 + $0x48] sm:$0xf0] %v219
    %v224 = vld [vmem:[#allocation2] sm:$0xff]
    %v225 = vld [vmem:[#allocation2 + $0x8] sm:$0xf]
    %v228 = vcombine.high %v224, %v224
    %229 = vrot.lane.b32.xlu0 %v224, 79
    %v230 = vpop.permute.xlu0 %229
    %231 = vrot.lane.b32.xlu0 %v228, 79
    %v232 = vpop.permute.xlu0 %231
    %233 = vrot.lane.b32.xlu0 %v225, 79
    %v234 = vpop.permute.xlu0 %233
    %vm235 = vcmask 646144
    %v236 = vsel %vm235, %v230, %v232
    %v237 = vsel %vm235, %v232, %v234
    %240 = vrot.lane.b32.xlu0 %v224, 81
    %v241 = vpop.permute.xlu0 %240
    %242 = vrot.lane.b32.xlu0 %v228, 81
    %v243 = vpop.permute.xlu0 %242
    %244 = vrot.lane.b32.xlu0 %v225, 81
    %v245 = vpop.permute.xlu0 %244
    %vm246 = vcmask 662528
    %v247 = vsel %vm246, %v241, %v243
    %v248 = vsel %vm246, %v243, %v245
    %v251 = vsel %vm108, %v236, %v247
    %v252 = vsel %vm109, %v237, %v248
    %253 = vst [vmem:[#allocation3 + $0x60] sm:$0xf] %v251
    %254 = vst [vmem:[#allocation3 + $0x68] sm:$0xf] %v252
    %v255 = vcombine.low %v224, %v224
    %v256 = vcombine.low %v225, %v225
    %257 = vrot.lane.b32.xlu0 %v255, 80
    %v258 = vpop.permute.xlu0 %257
    %259 = vrot.lane.b32.xlu0 %v224, 80
    %v260 = vpop.permute.xlu0 %259
    %261 = vrot.lane.b32.xlu0 %v256, 80
    %v262 = vpop.permute.xlu0 %261
    %vm263 = vcmask 654336
    %v264 = vsel %vm263, %v258, %v260
    %v265 = vsel %vm263, %v260, %v262
    %268 = vst [vmem:[#allocation3 + $0x60] sm:$0xf0] %v264
    %269 = vst [vmem:[#allocation3 + $0x68] sm:$0xf0] %v265
    %v270 = vsel %vm112, %v247, %v236
    %v271 = vsel %vm113, %v248, %v237
    %272 = vst [vmem:[#allocation3 + $0x80] sm:$0xf] %v270
    %273 = vst [vmem:[#allocation3 + $0x88] sm:$0xf] %v271
    %s274 = scalar_lea.vmem [#allocation4], 8
    %v275 = vld [vmem:[%s274] sm:$0xff]
    %277 = vrot.lane.b32.xlu0 %v275, 32
    %v278 = vpop.permute.xlu0 %277
    %v279 = vrot.slane %v278, 4
    %v280 = vsel %vm88, %v279, %v278
    %283 = vst.msk [vmem:[#allocation2] sm:$0xff] %vm94, %v280
    %284 = vst.msk [vmem:[#allocation2 + $0x8] sm:$0xf] %vm96, %v279
    %285 = vst.msk [vmem:[#allocation2] sm:$0xf] %vm98, %v275
    %286 = vrot.lane.b32.xlu0 %v275, 64
    %v287 = vpop.permute.xlu0 %286
    %v288 = vrot.slane %v287, 4
    %290 = vst.msk [vmem:[#allocation2 + $0x8] sm:$0xf] %vm104, %v288
    %v291 = vld [vmem:[#allocation2] sm:$0xff]
    %v292 = vld [vmem:[#allocation2 + $0x8] sm:$0xf]
    %v295 = vcombine.high %v291, %v291
    %296 = vrot.lane.b32.xlu0 %v291, 111
    %v297 = vpop.permute.xlu0 %296
    %298 = vrot.lane.b32.xlu0 %v295, 111
    %v299 = vpop.permute.xlu0 %298
    %300 = vrot.lane.b32.xlu0 %v292, 111
    %v301 = vpop.permute.xlu0 %300
    %v302 = vsel %vm125, %v297, %v299
    %v303 = vsel %vm125, %v299, %v301
    %306 = vrot.lane.b32.xlu0 %v291, 113
    %v307 = vpop.permute.xlu0 %306
    %308 = vrot.lane.b32.xlu0 %v295, 113
    %v309 = vpop.permute.xlu0 %308
    %310 = vrot.lane.b32.xlu0 %v292, 113
    %v311 = vpop.permute.xlu0 %310
    %v312 = vsel %vm136, %v307, %v309
    %v313 = vsel %vm136, %v309, %v311
    %v316 = vsel %vm108, %v302, %v312
    %v317 = vsel %vm109, %v303, %v313
    %318 = vst [vmem:[#allocation3 + $0x10] sm:$0xf] %v316
    %319 = vst [vmem:[#allocation3 + $0x18] sm:$0xf] %v317
    %v320 = vcombine.low %v291, %v291
    %v321 = vcombine.low %v292, %v292
    %322 = vrot.lane.b32.xlu0 %v320, 112
    %v323 = vpop.permute.xlu0 %322
    %324 = vrot.lane.b32.xlu0 %v291, 112
    %v325 = vpop.permute.xlu0 %324
    %326 = vrot.lane.b32.xlu0 %v321, 112
    %v327 = vpop.permute.xlu0 %326
    %v328 = vsel %vm153, %v323, %v325
    %v329 = vsel %vm153, %v325, %v327
    %332 = vst [vmem:[#allocation3 + $0x10] sm:$0xf0] %v328
    %333 = vst [vmem:[#allocation3 + $0x18] sm:$0xf0] %v329
    %v334 = vsel %vm112, %v312, %v302
    %v335 = vsel %vm113, %v313, %v303
    %336 = vst [vmem:[#allocation3 + $0x30] sm:$0xf] %v334
    %337 = vst [vmem:[#allocation3 + $0x38] sm:$0xf] %v335
    %v338 = vld [vmem:[#allocation2] sm:$0xff]
    %v339 = vld [vmem:[#allocation2 + $0x8] sm:$0xf]
    %v342 = vcombine.high %v338, %v338
    %343 = vrot.lane.b32.xlu0 %v338, 95
    %v344 = vpop.permute.xlu0 %343
    %345 = vrot.lane.b32.xlu0 %v342, 95
    %v346 = vpop.permute.xlu0 %345
    %347 = vrot.lane.b32.xlu0 %v339, 95
    %v348 = vpop.permute.xlu0 %347
    %v349 = vsel %vm175, %v344, %v346
    %v350 = vsel %vm175, %v346, %v348
    %353 = vrot.lane.b32.xlu0 %v338, 97
    %v354 = vpop.permute.xlu0 %353
    %355 = vrot.lane.b32.xlu0 %v342, 97
    %v356 = vpop.permute.xlu0 %355
    %357 = vrot.lane.b32.xlu0 %v339, 97
    %v358 = vpop.permute.xlu0 %357
    %v359 = vsel %vm186, %v354, %v356
    %v360 = vsel %vm186, %v356, %v358
    %v363 = vsel %vm108, %v349, %v359
    %v364 = vsel %vm109, %v350, %v360
    %v367 = vrot.slane %v363, 4
    %v368 = vrot.slane %v364, 4
    %371 = vst [vmem:[#allocation3 + $0x30] sm:$0xf0] %v367
    %372 = vst [vmem:[#allocation3 + $0x38] sm:$0xf0] %v368
    %373 = vrot.lane.b32.xlu0 %v338, 96
    %v374 = vpop.permute.xlu0 %373
    %375 = vrot.lane.b32.xlu0 %v342, 96
    %v376 = vpop.permute.xlu0 %375
    %377 = vrot.lane.b32.xlu0 %v339, 96
    %v378 = vpop.permute.xlu0 %377
    %v379 = vsel %vm207, %v374, %v376
    %v380 = vsel %vm207, %v376, %v378
    %383 = vst [vmem:[#allocation3 + $0x50] sm:$0xf] %v379
    %384 = vst [vmem:[#allocation3 + $0x58] sm:$0xf] %v380
    %v385 = vsel %vm112, %v359, %v349
    %v386 = vsel %vm113, %v360, %v350
    %v389 = vrot.slane %v385, 4
    %v390 = vrot.slane %v386, 4
    %393 = vst [vmem:[#allocation3 + $0x50] sm:$0xf0] %v389
    %394 = vst [vmem:[#allocation3 + $0x58] sm:$0xf0] %v390
    %v395 = vld [vmem:[#allocation2] sm:$0xff]
    %v396 = vld [vmem:[#allocation2 + $0x8] sm:$0xf]
    %v399 = vcombine.high %v395, %v395
    %400 = vrot.lane.b32.xlu0 %v395, 79
    %v401 = vpop.permute.xlu0 %400
    %402 = vrot.lane.b32.xlu0 %v399, 79
    %v403 = vpop.permute.xlu0 %402
    %404 = vrot.lane.b32.xlu0 %v396, 79
    %v405 = vpop.permute.xlu0 %404
    %v406 = vsel %vm235, %v401, %v403
    %v407 = vsel %vm235, %v403, %v405
    %410 = vrot.lane.b32.xlu0 %v395, 81
    %v411 = vpop.permute.xlu0 %410
    %412 = vrot.lane.b32.xlu0 %v399, 81
    %v413 = vpop.permute.xlu0 %412
    %414 = vrot.lane.b32.xlu0 %v396, 81
    %v415 = vpop.permute.xlu0 %414
    %v416 = vsel %vm246, %v411, %v413
    %v417 = vsel %vm246, %v413, %v415
    %v420 = vsel %vm108, %v406, %v416
    %v421 = vsel %vm109, %v407, %v417
    %422 = vst [vmem:[#allocation3 + $0x70] sm:$0xf] %v420
    %423 = vst [vmem:[#allocation3 + $0x78] sm:$0xf] %v421
    %v424 = vcombine.low %v395, %v395
    %v425 = vcombine.low %v396, %v396
    %426 = vrot.lane.b32.xlu0 %v424, 80
    %v427 = vpop.permute.xlu0 %426
    %428 = vrot.lane.b32.xlu0 %v395, 80
    %v429 = vpop.permute.xlu0 %428
    %430 = vrot.lane.b32.xlu0 %v425, 80
    %v431 = vpop.permute.xlu0 %430
    %v432 = vsel %vm263, %v427, %v429
    %v433 = vsel %vm263, %v429, %v431
    %436 = vst [vmem:[#allocation3 + $0x70] sm:$0xf0] %v432
    %437 = vst [vmem:[#allocation3 + $0x78] sm:$0xf0] %v433
    %v438 = vsel %vm112, %v416, %v406
    %v439 = vsel %vm113, %v417, %v407
    %440 = vst [vmem:[#allocation3 + $0x90] sm:$0xf] %v438
    %441 = vst [vmem:[#allocation3 + $0x98] sm:$0xf] %v439
    %v442 = vld [vmem:[#allocation7] sm:$0xf]
    %v443 = vld [vmem:[#allocation3] sm:$0xff]
    %v444 = vld [vmem:[#allocation3 + $0x8] sm:$0xff]
    %v445 = vld [vmem:[#allocation3 + $0x10] sm:$0xff]
    %v446 = vld [vmem:[#allocation3 + $0x18] sm:$0xff]
    %v447 = vld [vmem:[#allocation3 + $0x20] sm:$0xff]
    %v448 = vld [vmem:[#allocation3 + $0x28] sm:$0xff]
    %v449 = vld [vmem:[#allocation3 + $0x30] sm:$0xff]
    %v450 = vld [vmem:[#allocation3 + $0x38] sm:$0xff]
    %v451 = vld [vmem:[#allocation3 + $0x40] sm:$0xff]
    %v452 = vld [vmem:[#allocation3 + $0x48] sm:$0xff]
    %v453 = vld [vmem:[#allocation3 + $0x50] sm:$0xff]
    %v454 = vld [vmem:[#allocation3 + $0x58] sm:$0xff]
    %v455 = vld [vmem:[#allocation3 + $0x60] sm:$0xff]
    %v456 = vld [vmem:[#allocation3 + $0x68] sm:$0xff]
    %v457 = vld [vmem:[#allocation3 + $0x70] sm:$0xff]
    %v458 = vld [vmem:[#allocation3 + $0x78] sm:$0xff]
    %v459 = vld [vmem:[#allocation3 + $0x80] sm:$0xf]
    %v460 = vld [vmem:[#allocation3 + $0x88] sm:$0xf]
    %v461 = vld [vmem:[#allocation3 + $0x90] sm:$0xf]
    %v462 = vld [vmem:[#allocation3 + $0x98] sm:$0xf]
    %vm463 = vcmask 293888
    %v465 = vsel %vm463, %v442, 0
    %vm467 = vcmask 1043456
    %v469 = vsel %vm467, %v459, 0
    %v472 = vsel %vm467, %v460, 0
    %v475 = vsel %vm467, %v461, 0
    %v478 = vsel %vm467, %v462, 0
    %480 = vmatprep.subr.mxu0 0.0
    %481 = vmatpush1.msra.mxu0 0.0
    %482 = vmatprep.subr.mxu0 0.0
    %483 = vmatpush1.msra.mxu0 0.0
    %484 = vmatprep.subr.mxu0 0.0
    %485 = vmatpush1.msra.mxu0 0.0
    %486 = vmatprep.subr.mxu0 0.0
    %487 = vmatpush1.msra.mxu0 0.0
    %488 = vmatprep.subr.mxu0 0.0
    %489 = vmatpush1.msra.mxu0 0.0
    %490 = vmatprep.subr.mxu0 0.0
    %491 = vmatpush1.msra.mxu0 0.0
    %492 = vmatprep.subr.mxu0 0.0
    %493 = vmatpush1.msra.mxu0 0.0
    %494 = vmatprep.subr.mxu0 0.0
    %495 = vmatpush1.msra.mxu0 0.0
    %496 = vmatprep.subr.mxu0 0.0
    %497 = vmatpush1.msra.mxu0 0.0
    %498 = vmatprep.subr.mxu0 0.0
    %499 = vmatpush1.msra.mxu0 0.0
    %500 = vmatprep.subr.mxu0 0.0
    %501 = vmatpush1.msra.mxu0 0.0
    %502 = vmatprep.subr.mxu0 %v472
    %503 = vmatpush1.msra.mxu0 %v469
    %504 = vmatprep.subr.mxu0 %v456
    %505 = vmatpush1.msra.mxu0 %v455
    %506 = vmatprep.subr.mxu0 %v452
    %507 = vmatpush1.msra.mxu0 %v451
    %508 = vmatprep.subr.mxu0 %v448
    %509 = vmatpush1.msra.mxu0 %v447
    %510 = vmatprep.subr.mxu0 %v444
    %511 = vmatpush1.msra.mxu0 %v443
    %512 = vmatprep.subr.mxu0 0.0
    %513 = vmatpush2.msra.mxu0 0.0
    %514 = vmatprep.subr.mxu0 0.0
    %515 = vmatpush2.msra.mxu0 0.0
    %516 = vmatprep.subr.mxu0 0.0
    %517 = vmatpush2.msra.mxu0 0.0
    %518 = vmatprep.subr.mxu0 0.0
    %519 = vmatpush2.msra.mxu0 0.0
    %520 = vmatprep.subr.mxu0 0.0
    %521 = vmatpush2.msra.mxu0 0.0
    %522 = vmatprep.subr.mxu0 0.0
    %523 = vmatpush2.msra.mxu0 0.0
    %524 = vmatprep.subr.mxu0 0.0
    %525 = vmatpush2.msra.mxu0 0.0
    %526 = vmatprep.subr.mxu0 0.0
    %527 = vmatpush2.msra.mxu0 0.0
    %528 = vmatprep.subr.mxu0 0.0
    %529 = vmatpush2.msra.mxu0 0.0
    %530 = vmatprep.subr.mxu0 0.0
    %531 = vmatpush2.msra.mxu0 0.0
    %532 = vmatprep.subr.mxu0 0.0
    %533 = vmatpush2.msra.mxu0 0.0
    %534 = vmatprep.subr.mxu0 0.0
    %535 = vmatpush2.msra.mxu0 0.0
    %536 = vmatprep.subr.mxu0 0.0
    %537 = vmatpush2.msra.mxu0 0.0
    %538 = vmatprep.subr.mxu0 0.0
    %539 = vmatpush2.msra.mxu0 0.0
    %540 = vmatprep.subr.mxu0 0.0
    %541 = vmatpush2.msra.mxu0 0.0
    %542 = vmatprep.subr.mxu0 0.0
    %543 = vmatpush2.msra.mxu0 0.0
    %544 = vmatprep.mubr.f32.mxu0 0.0
    %545 = vmatmul.mubr.f32.gmra.mxu0 %v465
    %v546 = vpop.f32.mrf.mxu0
    %v547 = vadd.f32 0.0, %v546
    %v548 = vpop.f32.mrf.mxu0
    %v549 = vadd.f32 0.0, %v548
    %550 = vdwg.mxu0
    %551 = vmatprep.subr.mxu0 0.0
    %552 = vmatpush1.msra.mxu0 0.0
    %553 = vmatprep.subr.mxu0 0.0
    %554 = vmatpush1.msra.mxu0 0.0
    %555 = vmatprep.subr.mxu0 0.0
    %556 = vmatpush1.msra.mxu0 0.0
    %557 = vmatprep.subr.mxu0 0.0
    %558 = vmatpush1.msra.mxu0 0.0
    %559 = vmatprep.subr.mxu0 0.0
    %560 = vmatpush1.msra.mxu0 0.0
    %561 = vmatprep.subr.mxu0 0.0
    %562 = vmatpush1.msra.mxu0 0.0
    %563 = vmatprep.subr.mxu0 0.0
    %564 = vmatpush1.msra.mxu0 0.0
    %565 = vmatprep.subr.mxu0 0.0
    %566 = vmatpush1.msra.mxu0 0.0
    %567 = vmatprep.subr.mxu0 0.0
    %568 = vmatpush1.msra.mxu0 0.0
    %569 = vmatprep.subr.mxu0 0.0
    %570 = vmatpush1.msra.mxu0 0.0
    %571 = vmatprep.subr.mxu0 0.0
    %572 = vmatpush1.msra.mxu0 0.0
    %573 = vmatprep.subr.mxu0 %v478
    %574 = vmatpush1.msra.mxu0 %v475
    %575 = vmatprep.subr.mxu0 %v458
    %576 = vmatpush1.msra.mxu0 %v457
    %577 = vmatprep.subr.mxu0 %v454
    %578 = vmatpush1.msra.mxu0 %v453
    %579 = vmatprep.subr.mxu0 %v450
    %580 = vmatpush1.msra.mxu0 %v449
    %581 = vmatprep.subr.mxu0 %v446
    %582 = vmatpush1.msra.mxu0 %v445
    %583 = vmatprep.subr.mxu0 0.0
    %584 = vmatpush2.msra.mxu0 0.0
    %585 = vmatprep.subr.mxu0 0.0
    %586 = vmatpush2.msra.mxu0 0.0
    %587 = vmatprep.subr.mxu0 0.0
    %588 = vmatpush2.msra.mxu0 0.0
    %589 = vmatprep.subr.mxu0 0.0
    %590 = vmatpush2.msra.mxu0 0.0
    %591 = vmatprep.subr.mxu0 0.0
    %592 = vmatpush2.msra.mxu0 0.0
    %593 = vmatprep.subr.mxu0 0.0
    %594 = vmatpush2.msra.mxu0 0.0
    %595 = vmatprep.subr.mxu0 0.0
    %596 = vmatpush2.msra.mxu0 0.0
    %597 = vmatprep.subr.mxu0 0.0
    %598 = vmatpush2.msra.mxu0 0.0
    %599 = vmatprep.subr.mxu0 0.0
    %600 = vmatpush2.msra.mxu0 0.0
    %601 = vmatprep.subr.mxu0 0.0
    %602 = vmatpush2.msra.mxu0 0.0
    %603 = vmatprep.subr.mxu0 0.0
    %604 = vmatpush2.msra.mxu0 0.0
    %605 = vmatprep.subr.mxu0 0.0
    %606 = vmatpush2.msra.mxu0 0.0
    %607 = vmatprep.subr.mxu0 0.0
    %608 = vmatpush2.msra.mxu0 0.0
    %609 = vmatprep.subr.mxu0 0.0
    %610 = vmatpush2.msra.mxu0 0.0
    %611 = vmatprep.subr.mxu0 0.0
    %612 = vmatpush2.msra.mxu0 0.0
    %613 = vmatprep.subr.mxu0 0.0
    %614 = vmatpush2.msra.mxu0 0.0
    %615 = vmatprep.mubr.f32.mxu0 0.0
    %616 = vmatmul.mubr.f32.gmra.mxu0 %v465
    %v617 = vpop.f32.mrf.mxu0
    %v618 = vadd.f32 0.0, %v617
    %v619 = vpop.f32.mrf.mxu0
    %v620 = vadd.f32 0.0, %v619
    %621 = vdwg.mxu0
    %vm622 = vcmp.ge.f32.partialorder %v547, 0.0
    %vm623 = vcmp.ge.f32.partialorder %v549, 0.0
    %vm624 = vcmp.ge.f32.partialorder %v618, 0.0
    %vm625 = vcmp.ge.f32.partialorder %v620, 0.0
    %v626 = vmul.f32 %v547, 0.2
    %v627 = vmul.f32 %v549, 0.2
    %v628 = vmul.f32 %v618, 0.2
    %v629 = vmul.f32 %v620, 0.2
    %v630 = vsel %vm622, %v547, %v626
    %v631 = vsel %vm623, %v549, %v627
    %v632 = vsel %vm624, %v618, %v628
    %v633 = vsel %vm625, %v620, %v629
    %v636 = vcombine.low %v630, %v631
    %637 = vrot.lane.b32.xlu0 %v636, 32
    %v638 = vpop.permute.xlu0 %637
    %v639 = vrot.slane %v638, 4
    %v640 = vsel %vm88, %v639, %v638
    %643 = vst.msk [vmem:[#allocation2] sm:$0xff] %vm94, %v640
    %644 = vst.msk [vmem:[#allocation2 + $0x8] sm:$0xf] %vm96, %v639
    %645 = vst.msk [vmem:[#allocation2] sm:$0xf] %vm98, %v630
    %646 = vrot.lane.b32.xlu0 %v631, 64
    %v647 = vpop.permute.xlu0 %646
    %649 = vst.msk [vmem:[#allocation2 + $0x8] sm:$0xf] %vm104, %v647
    %v650 = vld [vmem:[#allocation2] sm:$0xff]
    %v651 = vld [vmem:[#allocation2 + $0x8] sm:$0xf]
    %v654 = vcombine.high %v650, %v650
    %655 = vrot.lane.b32.xlu0 %v650, 111
    %v656 = vpop.permute.xlu0 %655
    %657 = vrot.lane.b32.xlu0 %v654, 111
    %v658 = vpop.permute.xlu0 %657
    %659 = vrot.lane.b32.xlu0 %v651, 111
    %v660 = vpop.permute.xlu0 %659
    %v661 = vsel %vm125, %v656, %v658
    %v662 = vsel %vm125, %v658, %v660
    %665 = vrot.lane.b32.xlu0 %v650, 113
    %v666 = vpop.permute.xlu0 %665
    %667 = vrot.lane.b32.xlu0 %v654, 113
    %v668 = vpop.permute.xlu0 %667
    %669 = vrot.lane.b32.xlu0 %v651, 113
    %v670 = vpop.permute.xlu0 %669
    %v671 = vsel %vm136, %v666, %v668
    %v672 = vsel %vm136, %v668, %v670
    %v675 = vsel %vm108, %v661, %v671
    %v676 = vsel %vm109, %v662, %v672
    %677 = vst [vmem:[#allocation3] sm:$0xf] %v675
    %678 = vst [vmem:[#allocation3 + $0x8] sm:$0xf] %v676
    %v679 = vcombine.low %v650, %v650
    %v680 = vcombine.low %v651, %v651
    %681 = vrot.lane.b32.xlu0 %v679, 112
    %v682 = vpop.permute.xlu0 %681
    %683 = vrot.lane.b32.xlu0 %v650, 112
    %v684 = vpop.permute.xlu0 %683
    %685 = vrot.lane.b32.xlu0 %v680, 112
    %v686 = vpop.permute.xlu0 %685
    %v687 = vsel %vm153, %v682, %v684
    %v688 = vsel %vm153, %v684, %v686
    %691 = vst [vmem:[#allocation3] sm:$0xf0] %v687
    %692 = vst [vmem:[#allocation3 + $0x8] sm:$0xf0] %v688
    %v693 = vsel %vm112, %v671, %v661
    %v694 = vsel %vm113, %v672, %v662
    %695 = vst [vmem:[#allocation3 + $0x20] sm:$0xf] %v693
    %696 = vst [vmem:[#allocation3 + $0x28] sm:$0xf] %v694
    %v697 = vld [vmem:[#allocation2] sm:$0xff]
    %v698 = vld [vmem:[#allocation2 + $0x8] sm:$0xf]
    %v701 = vcombine.high %v697, %v697
    %702 = vrot.lane.b32.xlu0 %v697, 95
    %v703 = vpop.permute.xlu0 %702
    %704 = vrot.lane.b32.xlu0 %v701, 95
    %v705 = vpop.permute.xlu0 %704
    %706 = vrot.lane.b32.xlu0 %v698, 95
    %v707 = vpop.permute.xlu0 %706
    %v708 = vsel %vm175, %v703, %v705
    %v709 = vsel %vm175, %v705, %v707
    %712 = vrot.lane.b32.xlu0 %v697, 97
    %v713 = vpop.permute.xlu0 %712
    %714 = vrot.lane.b32.xlu0 %v701, 97
    %v715 = vpop.permute.xlu0 %714
    %716 = vrot.lane.b32.xlu0 %v698, 97
    %v717 = vpop.permute.xlu0 %716
    %v718 = vsel %vm186, %v713, %v715
    %v719 = vsel %vm186, %v715, %v717
    %v722 = vsel %vm108, %v708, %v718
    %v723 = vsel %vm109, %v709, %v719
    %v726 = vrot.slane %v722, 4
    %v727 = vrot.slane %v723, 4
    %730 = vst [vmem:[#allocation3 + $0x20] sm:$0xf0] %v726
    %731 = vst [vmem:[#allocation3 + $0x28] sm:$0xf0] %v727
    %732 = vrot.lane.b32.xlu0 %v697, 96
    %v733 = vpop.permute.xlu0 %732
    %734 = vrot.lane.b32.xlu0 %v701, 96
    %v735 = vpop.permute.xlu0 %734
    %736 = vrot.lane.b32.xlu0 %v698, 96
    %v737 = vpop.permute.xlu0 %736
    %v738 = vsel %vm207, %v733, %v735
    %v739 = vsel %vm207, %v735, %v737
    %742 = vst [vmem:[#allocation3 + $0x40] sm:$0xf] %v738
    %743 = vst [vmem:[#allocation3 + $0x48] sm:$0xf] %v739
    %v744 = vsel %vm112, %v718, %v708
    %v745 = vsel %vm113, %v719, %v709
    %v748 = vrot.slane %v744, 4
    %v749 = vrot.slane %v745, 4
    %752 = vst [vmem:[#allocation3 + $0x40] sm:$0xf0] %v748
    %753 = vst [vmem:[#allocation3 + $0x48] sm:$0xf0] %v749
    %v754 = vld [vmem:[#allocation2] sm:$0xff]
    %v755 = vld [vmem:[#allocation2 + $0x8] sm:$0xf]
    %v758 = vcombine.high %v754, %v754
    %759 = vrot.lane.b32.xlu0 %v754, 79
    %v760 = vpop.permute.xlu0 %759
    %761 = vrot.lane.b32.xlu0 %v758, 79
    %v762 = vpop.permute.xlu0 %761
    %763 = vrot.lane.b32.xlu0 %v755, 79
    %v764 = vpop.permute.xlu0 %763
    %v765 = vsel %vm235, %v760, %v762
    %v766 = vsel %vm235, %v762, %v764
    %769 = vrot.lane.b32.xlu0 %v754, 81
    %v770 = vpop.permute.xlu0 %769
    %771 = vrot.lane.b32.xlu0 %v758, 81
    %v772 = vpop.permute.xlu0 %771
    %773 = vrot.lane.b32.xlu0 %v755, 81
    %v774 = vpop.permute.xlu0 %773
    %v775 = vsel %vm246, %v770, %v772
    %v776 = vsel %vm246, %v772, %v774
    %v779 = vsel %vm108, %v765, %v775
    %v780 = vsel %vm109, %v766, %v776
    %781 = vst [vmem:[#allocation3 + $0x60] sm:$0xf] %v779
    %782 = vst [vmem:[#allocation3 + $0x68] sm:$0xf] %v780
    %v783 = vcombine.low %v754, %v754
    %v784 = vcombine.low %v755, %v755
    %785 = vrot.lane.b32.xlu0 %v783, 80
    %v786 = vpop.permute.xlu0 %785
    %787 = vrot.lane.b32.xlu0 %v754, 80
    %v788 = vpop.permute.xlu0 %787
    %789 = vrot.lane.b32.xlu0 %v784, 80
    %v790 = vpop.permute.xlu0 %789
    %v791 = vsel %vm263, %v786, %v788
    %v792 = vsel %vm263, %v788, %v790
    %795 = vst [vmem:[#allocation3 + $0x60] sm:$0xf0] %v791
    %796 = vst [vmem:[#allocation3 + $0x68] sm:$0xf0] %v792
    %v797 = vsel %vm112, %v775, %v765
    %v798 = vsel %vm113, %v776, %v766
    %799 = vst [vmem:[#allocation3 + $0x80] sm:$0xf] %v797
    %800 = vst [vmem:[#allocation3 + $0x88] sm:$0xf] %v798
    %v803 = vcombine.low %v632, %v633
    %804 = vrot.lane.b32.xlu0 %v803, 32
    %v805 = vpop.permute.xlu0 %804
    %v806 = vrot.slane %v805, 4
    %v807 = vsel %vm88, %v806, %v805
    %810 = vst.msk [vmem:[#allocation2] sm:$0xff] %vm94, %v807
    %811 = vst.msk [vmem:[#allocation2 + $0x8] sm:$0xf] %vm96, %v806
    %812 = vst.msk [vmem:[#allocation2] sm:$0xf] %vm98, %v632
    %813 = vrot.lane.b32.xlu0 %v633, 64
    %v814 = vpop.permute.xlu0 %813
    %816 = vst.msk [vmem:[#allocation2 + $0x8] sm:$0xf] %vm104, %v814
    %v817 = vld [vmem:[#allocation2] sm:$0xff]
    %v818 = vld [vmem:[#allocation2 + $0x8] sm:$0xf]
    %v821 = vcombine.high %v817, %v817
    %822 = vrot.lane.b32.xlu0 %v817, 111
    %v823 = vpop.permute.xlu0 %822
    %824 = vrot.lane.b32.xlu0 %v821, 111
    %v825 = vpop.permute.xlu0 %824
    %826 = vrot.lane.b32.xlu0 %v818, 111
    %v827 = vpop.permute.xlu0 %826
    %v828 = vsel %vm125, %v823, %v825
    %v829 = vsel %vm125, %v825, %v827
    %832 = vrot.lane.b32.xlu0 %v817, 113
    %v833 = vpop.permute.xlu0 %832
    %834 = vrot.lane.b32.xlu0 %v821, 113
    %v835 = vpop.permute.xlu0 %834
    %836 = vrot.lane.b32.xlu0 %v818, 113
    %v837 = vpop.permute.xlu0 %836
    %v838 = vsel %vm136, %v833, %v835
    %v839 = vsel %vm136, %v835, %v837
    %v842 = vsel %vm108, %v828, %v838
    %v843 = vsel %vm109, %v829, %v839
    %844 = vst [vmem:[#allocation3 + $0x10] sm:$0xf] %v842
    %845 = vst [vmem:[#allocation3 + $0x18] sm:$0xf] %v843
    %v846 = vcombine.low %v817, %v817
    %v847 = vcombine.low %v818, %v818
    %848 = vrot.lane.b32.xlu0 %v846, 112
    %v849 = vpop.permute.xlu0 %848
    %850 = vrot.lane.b32.xlu0 %v817, 112
    %v851 = vpop.permute.xlu0 %850
    %852 = vrot.lane.b32.xlu0 %v847, 112
    %v853 = vpop.permute.xlu0 %852
    %v854 = vsel %vm153, %v849, %v851
    %v855 = vsel %vm153, %v851, %v853
    %858 = vst [vmem:[#allocation3 + $0x10] sm:$0xf0] %v854
    %859 = vst [vmem:[#allocation3 + $0x18] sm:$0xf0] %v855
    %v860 = vsel %vm112, %v838, %v828
    %v861 = vsel %vm113, %v839, %v829
    %862 = vst [vmem:[#allocation3 + $0x30] sm:$0xf] %v860
    %863 = vst [vmem:[#allocation3 + $0x38] sm:$0xf] %v861
    %v864 = vld [vmem:[#allocation2] sm:$0xff]
    %v865 = vld [vmem:[#allocation2 + $0x8] sm:$0xf]
    %v868 = vcombine.high %v864, %v864
    %869 = vrot.lane.b32.xlu0 %v864, 95
    %v870 = vpop.permute.xlu0 %869
    %871 = vrot.lane.b32.xlu0 %v868, 95
    %v872 = vpop.permute.xlu0 %871
    %873 = vrot.lane.b32.xlu0 %v865, 95
    %v874 = vpop.permute.xlu0 %873
    %v875 = vsel %vm175, %v870, %v872
    %v876 = vsel %vm175, %v872, %v874
    %879 = vrot.lane.b32.xlu0 %v864, 97
    %v880 = vpop.permute.xlu0 %879
    %881 = vrot.lane.b32.xlu0 %v868, 97
    %v882 = vpop.permute.xlu0 %881
    %883 = vrot.lane.b32.xlu0 %v865, 97
    %v884 = vpop.permute.xlu0 %883
    %v885 = vsel %vm186, %v880, %v882
    %v886 = vsel %vm186, %v882, %v884
    %v889 = vsel %vm108, %v875, %v885
    %v890 = vsel %vm109, %v876, %v886
    %v893 = vrot.slane %v889, 4
    %v894 = vrot.slane %v890, 4
    %897 = vst [vmem:[#allocation3 + $0x30] sm:$0xf0] %v893
    %898 = vst [vmem:[#allocation3 + $0x38] sm:$0xf0] %v894
    %899 = vrot.lane.b32.xlu0 %v864, 96
    %v900 = vpop.permute.xlu0 %899
    %901 = vrot.lane.b32.xlu0 %v868, 96
    %v902 = vpop.permute.xlu0 %901
    %903 = vrot.lane.b32.xlu0 %v865, 96
    %v904 = vpop.permute.xlu0 %903
    %v905 = vsel %vm207, %v900, %v902
    %v906 = vsel %vm207, %v902, %v904
    %909 = vst [vmem:[#allocation3 + $0x50] sm:$0xf] %v905
    %910 = vst [vmem:[#allocation3 + $0x58] sm:$0xf] %v906
    %v911 = vsel %vm112, %v885, %v875
    %v912 = vsel %vm113, %v886, %v876
    %v915 = vrot.slane %v911, 4
    %v916 = vrot.slane %v912, 4
    %919 = vst [vmem:[#allocation3 + $0x50] sm:$0xf0] %v915
    %920 = vst [vmem:[#allocation3 + $0x58] sm:$0xf0] %v916
    %v921 = vld [vmem:[#allocation2] sm:$0xff]
    %v922 = vld [vmem:[#allocation2 + $0x8] sm:$0xf]
    %v925 = vcombine.high %v921, %v921
    %926 = vrot.lane.b32.xlu0 %v921, 79
    %v927 = vpop.permute.xlu0 %926
    %928 = vrot.lane.b32.xlu0 %v925, 79
    %v929 = vpop.permute.xlu0 %928
    %930 = vrot.lane.b32.xlu0 %v922, 79
    %v931 = vpop.permute.xlu0 %930
    %v932 = vsel %vm235, %v927, %v929
    %v933 = vsel %vm235, %v929, %v931
    %936 = vrot.lane.b32.xlu0 %v921, 81
    %v937 = vpop.permute.xlu0 %936
    %938 = vrot.lane.b32.xlu0 %v925, 81
    %v939 = vpop.permute.xlu0 %938
    %940 = vrot.lane.b32.xlu0 %v922, 81
    %v941 = vpop.permute.xlu0 %940
    %v942 = vsel %vm246, %v937, %v939
    %v943 = vsel %vm246, %v939, %v941
    %v946 = vsel %vm108, %v932, %v942
    %v947 = vsel %vm109, %v933, %v943
    %948 = vst [vmem:[#allocation3 + $0x70] sm:$0xf] %v946
    %949 = vst [vmem:[#allocation3 + $0x78] sm:$0xf] %v947
    %v950 = vcombine.low %v921, %v921
    %v951 = vcombine.low %v922, %v922
    %952 = vrot.lane.b32.xlu0 %v950, 80
    %v953 = vpop.permute.xlu0 %952
    %954 = vrot.lane.b32.xlu0 %v921, 80
    %v955 = vpop.permute.xlu0 %954
    %956 = vrot.lane.b32.xlu0 %v951, 80
    %v957 = vpop.permute.xlu0 %956
    %v958 = vsel %vm263, %v953, %v955
    %v959 = vsel %vm263, %v955, %v957
    %962 = vst [vmem:[#allocation3 + $0x70] sm:$0xf0] %v958
    %963 = vst [vmem:[#allocation3 + $0x78] sm:$0xf0] %v959
    %v964 = vsel %vm112, %v942, %v932
    %v965 = vsel %vm113, %v943, %v933
    %966 = vst [vmem:[#allocation3 + $0x90] sm:$0xf] %v964
    %967 = vst [vmem:[#allocation3 + $0x98] sm:$0xf] %v965
    %v968 = vld [vmem:[#allocation9] sm:$0xf]
    %v969 = vld [vmem:[#allocation3] sm:$0xff]
    %v970 = vld [vmem:[#allocation3 + $0x8] sm:$0xff]
    %v971 = vld [vmem:[#allocation3 + $0x10] sm:$0xff]
    %v972 = vld [vmem:[#allocation3 + $0x18] sm:$0xff]
    %v973 = vld [vmem:[#allocation3 + $0x20] sm:$0xff]
    %v974 = vld [vmem:[#allocation3 + $0x28] sm:$0xff]
    %v975 = vld [vmem:[#allocation3 + $0x30] sm:$0xff]
    %v976 = vld [vmem:[#allocation3 + $0x38] sm:$0xff]
    %v977 = vld [vmem:[#allocation3 + $0x40] sm:$0xff]
    %v978 = vld [vmem:[#allocation3 + $0x48] sm:$0xff]
    %v979 = vld [vmem:[#allocation3 + $0x50] sm:$0xff]
    %v980 = vld [vmem:[#allocation3 + $0x58] sm:$0xff]
    %v981 = vld [vmem:[#allocation3 + $0x60] sm:$0xff]
    %v982 = vld [vmem:[#allocation3 + $0x68] sm:$0xff]
    %v983 = vld [vmem:[#allocation3 + $0x70] sm:$0xff]
    %v984 = vld [vmem:[#allocation3 + $0x78] sm:$0xff]
    %v985 = vld [vmem:[#allocation3 + $0x80] sm:$0xf]
    %v986 = vld [vmem:[#allocation3 + $0x88] sm:$0xf]
    %v987 = vld [vmem:[#allocation3 + $0x90] sm:$0xf]
    %v988 = vld [vmem:[#allocation3 + $0x98] sm:$0xf]
    %v990 = vsel %vm463, %v968, 0
    %v993 = vsel %vm467, %v985, 0
    %v996 = vsel %vm467, %v986, 0
    %v999 = vsel %vm467, %v987, 0
    %v1002 = vsel %vm467, %v988, 0
    %1004 = vmatprep.subr.mxu0 0.0
    %1005 = vmatpush1.msra.mxu0 0.0
    %1006 = vmatprep.subr.mxu0 0.0
    %1007 = vmatpush1.msra.mxu0 0.0
    %1008 = vmatprep.subr.mxu0 0.0
    %1009 = vmatpush1.msra.mxu0 0.0
    %1010 = vmatprep.subr.mxu0 0.0
    %1011 = vmatpush1.msra.mxu0 0.0
    %1012 = vmatprep.subr.mxu0 0.0
    %1013 = vmatpush1.msra.mxu0 0.0
    %1014 = vmatprep.subr.mxu0 0.0
    %1015 = vmatpush1.msra.mxu0 0.0
    %1016 = vmatprep.subr.mxu0 0.0
    %1017 = vmatpush1.msra.mxu0 0.0
    %1018 = vmatprep.subr.mxu0 0.0
    %1019 = vmatpush1.msra.mxu0 0.0
    %1020 = vmatprep.subr.mxu0 0.0
    %1021 = vmatpush1.msra.mxu0 0.0
    %1022 = vmatprep.subr.mxu0 0.0
    %1023 = vmatpush1.msra.mxu0 0.0
    %1024 = vmatprep.subr.mxu0 0.0
    %1025 = vmatpush1.msra.mxu0 0.0
    %1026 = vmatprep.subr.mxu0 %v996
    %1027 = vmatpush1.msra.mxu0 %v993
    %1028 = vmatprep.subr.mxu0 %v982
    %1029 = vmatpush1.msra.mxu0 %v981
    %1030 = vmatprep.subr.mxu0 %v978
    %1031 = vmatpush1.msra.mxu0 %v977
    %1032 = vmatprep.subr.mxu0 %v974
    %1033 = vmatpush1.msra.mxu0 %v973
    %1034 = vmatprep.subr.mxu0 %v970
    %1035 = vmatpush1.msra.mxu0 %v969
    %1036 = vmatprep.subr.mxu0 0.0
    %1037 = vmatpush2.msra.mxu0 0.0
    %1038 = vmatprep.subr.mxu0 0.0
    %1039 = vmatpush2.msra.mxu0 0.0
    %1040 = vmatprep.subr.mxu0 0.0
    %1041 = vmatpush2.msra.mxu0 0.0
    %1042 = vmatprep.subr.mxu0 0.0
    %1043 = vmatpush2.msra.mxu0 0.0
    %1044 = vmatprep.subr.mxu0 0.0
    %1045 = vmatpush2.msra.mxu0 0.0
    %1046 = vmatprep.subr.mxu0 0.0
    %1047 = vmatpush2.msra.mxu0 0.0
    %1048 = vmatprep.subr.mxu0 0.0
    %1049 = vmatpush2.msra.mxu0 0.0
    %1050 = vmatprep.subr.mxu0 0.0
    %1051 = vmatpush2.msra.mxu0 0.0
    %1052 = vmatprep.subr.mxu0 0.0
    %1053 = vmatpush2.msra.mxu0 0.0
    %1054 = vmatprep.subr.mxu0 0.0
    %1055 = vmatpush2.msra.mxu0 0.0
    %1056 = vmatprep.subr.mxu0 0.0
    %1057 = vmatpush2.msra.mxu0 0.0
    %1058 = vmatprep.subr.mxu0 0.0
    %1059 = vmatpush2.msra.mxu0 0.0
    %1060 = vmatprep.subr.mxu0 0.0
    %1061 = vmatpush2.msra.mxu0 0.0
    %1062 = vmatprep.subr.mxu0 0.0
    %1063 = vmatpush2.msra.mxu0 0.0
    %1064 = vmatprep.subr.mxu0 0.0
    %1065 = vmatpush2.msra.mxu0 0.0
    %1066 = vmatprep.subr.mxu0 0.0
    %1067 = vmatpush2.msra.mxu0 0.0
    %1068 = vmatprep.mubr.f32.mxu0 0.0
    %1069 = vmatmul.mubr.f32.gmra.mxu0 %v990
    %v1070 = vpop.f32.mrf.mxu0
    %v1071 = vadd.f32 0.0, %v1070
    %v1072 = vpop.f32.mrf.mxu0
    %v1073 = vadd.f32 0.0, %v1072
    %1074 = vdwg.mxu0
    %1075 = vmatprep.subr.mxu0 0.0
    %1076 = vmatpush1.msra.mxu0 0.0
    %1077 = vmatprep.subr.mxu0 0.0
    %1078 = vmatpush1.msra.mxu0 0.0
    %1079 = vmatprep.subr.mxu0 0.0
    %1080 = vmatpush1.msra.mxu0 0.0
    %1081 = vmatprep.subr.mxu0 0.0
    %1082 = vmatpush1.msra.mxu0 0.0
    %1083 = vmatprep.subr.mxu0 0.0
    %1084 = vmatpush1.msra.mxu0 0.0
    %1085 = vmatprep.subr.mxu0 0.0
    %1086 = vmatpush1.msra.mxu0 0.0
    %1087 = vmatprep.subr.mxu0 0.0
    %1088 = vmatpush1.msra.mxu0 0.0
    %1089 = vmatprep.subr.mxu0 0.0
    %1090 = vmatpush1.msra.mxu0 0.0
    %1091 = vmatprep.subr.mxu0 0.0
    %1092 = vmatpush1.msra.mxu0 0.0
    %1093 = vmatprep.subr.mxu0 0.0
    %1094 = vmatpush1.msra.mxu0 0.0
    %1095 = vmatprep.subr.mxu0 0.0
    %1096 = vmatpush1.msra.mxu0 0.0
    %1097 = vmatprep.subr.mxu0 %v1002
    %1098 = vmatpush1.msra.mxu0 %v999
    %1099 = vmatprep.subr.mxu0 %v984
    %1100 = vmatpush1.msra.mxu0 %v983
    %1101 = vmatprep.subr.mxu0 %v980
    %1102 = vmatpush1.msra.mxu0 %v979
    %1103 = vmatprep.subr.mxu0 %v976
    %1104 = vmatpush1.msra.mxu0 %v975
    %1105 = vmatprep.subr.mxu0 %v972
    %1106 = vmatpush1.msra.mxu0 %v971
    %1107 = vmatprep.subr.mxu0 0.0
    %1108 = vmatpush2.msra.mxu0 0.0
    %1109 = vmatprep.subr.mxu0 0.0
    %1110 = vmatpush2.msra.mxu0 0.0
    %1111 = vmatprep.subr.mxu0 0.0
    %1112 = vmatpush2.msra.mxu0 0.0
    %1113 = vmatprep.subr.mxu0 0.0
    %1114 = vmatpush2.msra.mxu0 0.0
    %1115 = vmatprep.subr.mxu0 0.0
    %1116 = vmatpush2.msra.mxu0 0.0
    %1117 = vmatprep.subr.mxu0 0.0
    %1118 = vmatpush2.msra.mxu0 0.0
    %1119 = vmatprep.subr.mxu0 0.0
    %1120 = vmatpush2.msra.mxu0 0.0
    %1121 = vmatprep.subr.mxu0 0.0
    %1122 = vmatpush2.msra.mxu0 0.0
    %1123 = vmatprep.subr.mxu0 0.0
    %1124 = vmatpush2.msra.mxu0 0.0
    %1125 = vmatprep.subr.mxu0 0.0
    %1126 = vmatpush2.msra.mxu0 0.0
    %1127 = vmatprep.subr.mxu0 0.0
    %1128 = vmatpush2.msra.mxu0 0.0
    %1129 = vmatprep.subr.mxu0 0.0
    %1130 = vmatpush2.msra.mxu0 0.0
    %1131 = vmatprep.subr.mxu0 0.0
    %1132 = vmatpush2.msra.mxu0 0.0
    %1133 = vmatprep.subr.mxu0 0.0
    %1134 = vmatpush2.msra.mxu0 0.0
    %1135 = vmatprep.subr.mxu0 0.0
    %1136 = vmatpush2.msra.mxu0 0.0
    %1137 = vmatprep.subr.mxu0 0.0
    %1138 = vmatpush2.msra.mxu0 0.0
    %1139 = vmatprep.mubr.f32.mxu0 0.0
    %1140 = vmatmul.mubr.f32.gmra.mxu0 %v990
    %v1141 = vpop.f32.mrf.mxu0
    %v1142 = vadd.f32 0.0, %v1141
    %v1143 = vpop.f32.mrf.mxu0
    %v1144 = vadd.f32 0.0, %v1143
    %1145 = vdwg.mxu0
    %v1146 = vld [vmem:[#allocation4] sm:$0xff]
    %v1149 = vcombine.low %v1071, %v1073
    %v1151 = vadd.f32 %v1146, %v1149
    %1152 = vst [vmem:[#allocation10] sm:$0xff] %v1151
    %v1153 = vld [vmem:[%s274] sm:$0xff]
    %v1156 = vcombine.low %v1142, %v1144
    %v1158 = vadd.f32 %v1153, %v1156
    %s1159 = scalar_lea.vmem [#allocation10], 8
    %1160 = vst [vmem:[%s1159] sm:$0xff] %v1158
    // Predicated region
    $region26: #{tpu_custom_call.1} parent=1 // pred_check
      _
    $region27: #{tpu_custom_call.1} parent=1 // pred_check_branch
      %1162 = sbr.rel (0) target = $region29
    $region28: #{tpu_custom_call.1} parent=1 // pred_region
      %s1164 = ssub.s32 256, 256
      %1165 = vsyncadd [#allocation6], %s1164
      %s1166 = sshll.u32 [#allocation10], 4
      %s1167 = int_to_ptr.vmem [resolvable:$true] %s1166
      %1172 = dma.vmem_to_hbm [thread:$0]  %s1167, 256, %s3, [#allocation6], 128, 128, 8
    $region29: #{tpu_custom_call.1} parent=1 // pred_fallthru
      _
    // Predicated region
    $region30: #{tpu_custom_call.1} parent=1 // pred_check
      _
    $region31: #{tpu_custom_call.1} parent=1 // pred_check_branch
      %1174 = sbr.rel (0) target = $region33
    $region32: #{tpu_custom_call.1} parent=1 // pred_region
      %1175 = dma.done [#allocation6], 256
    $region33: #{tpu_custom_call.1} parent=1 // pred_fallthru
      _
    %1176 = vsyncpa [#allocation5], 1
    %1177 = vsyncpa [#allocation8], 1
    %1178 = vsyncpa [#allocation6], 1

</llo_original>
